<compile_context>
chip_gen: v6e
topology: v6e:2x2x1
jax: 0.10.0
libtpu: 0.0.40
codegen_flags: <defaults>
</compile_context>

<pallas_src>
import functools

import jax
import jax.numpy as jnp
from jax.experimental import pallas as pl
from jax.experimental.pallas import tpu as pltpu


# ---------------------------------------------------------------------------
# helpers
# ---------------------------------------------------------------------------
def _round_up(x, m):
    return (x + m - 1) // m * m


def _pad2d(x, rows, cols):
    r, c = x.shape
    return jnp.pad(x, ((0, rows - r), (0, cols - c)))


def _pad_row(v, cols):
    return jnp.pad(v, (0, cols - v.shape[0])).reshape(1, cols)


# ---------------------------------------------------------------------------
# Pallas kernels
# ---------------------------------------------------------------------------
def xw_kernel(x_ref, w_ref, o_ref):
    """Dense node-feature transform: o = X_tile @ W (bf16 in, f32 acc)."""
    o_ref[...] = jnp.dot(
        x_ref[...], w_ref[...], preferred_element_type=jnp.float32
    ).astype(o_ref.dtype)


def _accumulate(a_ref, xw_ref, acc_ref):
    """acc += A_tile @ XW_tile over the contraction (node) grid axis."""
    @pl.when(pl.program_id(1) == 0)
    def _():
        acc_ref[...] = jnp.zeros_like(acc_ref)

    acc_ref[...] += jnp.dot(
        a_ref[...], xw_ref[...], preferred_element_type=jnp.float32
    )


def aggregate_relu_kernel(a_ref, xw_ref, b_ref, o_ref, acc_ref):
    """Aggregation + bias + ReLU:  o = relu(A_hat @ (XW) + b)."""
    _accumulate(a_ref, xw_ref, acc_ref)

    @pl.when(pl.program_id(1) == pl.num_programs(1) - 1)
    def _():
        o_ref[...] = jnp.maximum(acc_ref[...] + b_ref[...], 0.0).astype(o_ref.dtype)


def aggregate_relu_norm_kernel(a_ref, xw_ref, b_ref,
                               bn_scale_ref, bn_shift_ref, ln_w_ref, ln_b_ref,
                               o_ref, acc_ref, *, n_valid_feat):
    """Second layer: aggregation + bias + ReLU + eval BatchNorm1d + LayerNorm."""
    _accumulate(a_ref, xw_ref, acc_ref)

    @pl.when(pl.program_id(1) == pl.num_programs(1) - 1)
    def _():
        h = jnp.maximum(acc_ref[...] + b_ref[...], 0.0)

        # BatchNorm1d (eval): per-feature affine with running stats folded in.
        # Padded feature lanes have scale=0 / shift=0, so they stay exactly 0.
        y = h * bn_scale_ref[...] + bn_shift_ref[...]

        # LayerNorm over the valid feature lanes only.  Padded lanes are zero,
        # so plain lane sums already cover just the valid features; one-pass
        # E[y^2] - mean^2 variance (single extra reduce, no mask).
        inv_f = 1.0 / float(n_valid_feat)
        mean = jnp.sum(y, axis=-1, keepdims=True) * inv_f
        mean_sq = jnp.sum(y * y, axis=-1, keepdims=True) * inv_f
        var = mean_sq - mean * mean
        y_hat = (y - mean) * jax.lax.rsqrt(var + 1e-5)
        o_ref[...] = (y_hat * ln_w_ref[...] + ln_b_ref[...]).astype(o_ref.dtype)


# ---------------------------------------------------------------------------
# pallas_call wrappers
# ---------------------------------------------------------------------------
def _dense_xw(x_bf16, w_bf16, tm):
    """XW = X @ W, tiled over node rows; output bf16 (feeds the MXU next)."""
    npad, fpad = x_bf16.shape
    hpad = w_bf16.shape[1]
    return pl.pallas_call(
        xw_kernel,
        out_shape=jax.ShapeDtypeStruct((npad, hpad), jnp.bfloat16),
        grid_spec=pltpu.PrefetchScalarGridSpec(
            num_scalar_prefetch=0,
            grid=(npad // tm,),
            in_specs=[
                pl.BlockSpec((tm, fpad), lambda i: (i, 0)),    # X tile
                pl.BlockSpec((fpad, hpad), lambda i: (0, 0)),  # W (resident)
            ],
            out_specs=pl.BlockSpec((tm, hpad), lambda i: (i, 0)),
        ),
        compiler_params=pltpu.CompilerParams(
            dimension_semantics=("parallel",),
        ),
        cost_estimate=pl.CostEstimate(
            flops=2 * npad * fpad * hpad,
            transcendentals=0,
            bytes_accessed=int(x_bf16.size * 2 + w_bf16.size * 2 + npad * hpad * 2),
        ),
    )(x_bf16, w_bf16)


def _aggregate_call(kernel, a_bf16, xw_bf16, b_row, extra_rows, tm, tk,
                    out_dtype, transcendentals=0):
    npad = a_bf16.shape[0]
    hpad = xw_bf16.shape[1]
    grid = (npad // tm, npad // tk)

    const_spec = pl.BlockSpec((1, hpad), lambda i, k: (0, 0))
    in_specs = [
        pl.BlockSpec((tm, tk), lambda i, k: (i, k)),     # A_hat tile
        pl.BlockSpec((tk, hpad), lambda i, k: (k, 0)),   # XW tile
        const_spec,                                      # bias row
    ] + [const_spec] * len(extra_rows)                   # bn/ln rows (layer 2)

    flops = 2 * npad * npad * hpad
    bytes_accessed = int(
        a_bf16.size * 2
        + xw_bf16.size * 2 * (npad // tm)                # XW re-read per row block
        + npad * hpad * jnp.dtype(out_dtype).itemsize
    )

    return pl.pallas_call(
        kernel,
        out_shape=jax.ShapeDtypeStruct((npad, hpad), out_dtype),
        grid_spec=pltpu.PrefetchScalarGridSpec(
            num_scalar_prefetch=0,
            grid=grid,
            in_specs=in_specs,
            out_specs=pl.BlockSpec((tm, hpad), lambda i, k: (i, 0)),
            scratch_shapes=[pltpu.VMEM((tm, hpad), jnp.float32)],
        ),
        compiler_params=pltpu.CompilerParams(
            dimension_semantics=("parallel", "arbitrary"),
        ),
        cost_estimate=pl.CostEstimate(
            flops=flops, transcendentals=transcendentals,
            bytes_accessed=bytes_accessed,
        ),
    )(a_bf16, xw_bf16, b_row, *extra_rows)


# ---------------------------------------------------------------------------
# graph preprocessing + full forward
# ---------------------------------------------------------------------------
def build_normalized_adjacency(edge_index, edge_weight, num_nodes):
    """Dense symmetric-normalized adjacency with self-loops (GCNConv gcn_norm)."""
    src = edge_index[0]
    dst = edge_index[1]
    a = jnp.zeros((num_nodes, num_nodes), jnp.float32)
    a = a.at[dst, src].add(edge_weight)            # A[dst, src] = w
    # add_remaining_self_loops: nodes without a self-loop get weight 1.
    diag = jnp.diagonal(a)
    a = a + jnp.diag(jnp.where(diag != 0, 0.0, 1.0))
    deg = a.sum(axis=1)                            # in-degree incl. self-loop
    dinv = jnp.where(deg > 0, jax.lax.rsqrt(deg), 0.0)
    return dinv[:, None] * a * dinv[None, :]


def gcn_forward(params, x, edge_index, edge_weight):
    n, nfeat = x.shape
    nhid = params["w1"].shape[1]
    nout = params["w2"].shape[1]

    # Tile sizing: 128-multiples ((8,128)/MXU friendly); go to 256 for larger
    # graphs to amortize per-grid-step overhead while keeping padding small.
    tile = 128 if n <= 512 else 256
    npad = _round_up(max(n, tile), tile)
    fpad = _round_up(nfeat, 128)
    hpad = _round_up(nhid, 128)
    opad = _round_up(nout, 128)

    a_hat = build_normalized_adjacency(edge_index, edge_weight, n)
    a_pad = _pad2d(a_hat, npad, npad).astype(jnp.bfloat16)
    x_pad = _pad2d(x, npad, fpad).astype(jnp.bfloat16)

    w1 = _pad2d(params["w1"], fpad, hpad).astype(jnp.bfloat16)
    b1 = _pad_row(params["b1"], hpad)
    w2 = _pad2d(params["w2"], hpad, opad).astype(jnp.bfloat16)
    b2 = _pad_row(params["b2"], opad)

    # Eval-mode BatchNorm1d folded into a per-feature affine (padded lanes 0).
    bn_scale = params["bn_gamma"] * jax.lax.rsqrt(params["bn_var"] + 1e-5)
    bn_shift = params["bn_beta"] - params["bn_mean"] * bn_scale
    norm_rows = (
        _pad_row(bn_scale, opad),
        _pad_row(bn_shift, opad),
        _pad_row(params["ln_w"], opad),
        _pad_row(params["ln_b"], opad),
    )

    # Layer 1: dropout (eval) -> identity ; XW first, then aggregate+bias+ReLU.
    xw1 = _dense_xw(x_pad, w1, tile)
    h = _aggregate_call(aggregate_relu_kernel, a_pad, xw1, b1, (),
                        tile, tile, jnp.bfloat16)

    # Layer 2: dropout (eval) -> identity ; BatchNorm + LayerNorm fused.
    xw2 = _dense_xw(h, w2, tile)
    out = _aggregate_call(
        functools.partial(aggregate_relu_norm_kernel, n_valid_feat=nout),
        a_pad, xw2, b2, norm_rows, tile, tile, jnp.float32,
        transcendentals=npad,
    )
    return out[:n, :nout]


def init_params(key, nfeat, nhid, noutput):
    k1, k2, k3, k4 = jax.random.split(key, 4)

    def glorot(k, fan_in, fan_out):
        lim = jnp.sqrt(6.0 / (fan_in + fan_out))
        return jax.random.uniform(k, (fan_in, fan_out), jnp.float32, -lim, lim)

    return {
        "w1": glorot(k1, nfeat, nhid),
        "b1": 0.1 * jax.random.normal(k2, (nhid,), jnp.float32),
        "w2": glorot(k3, nhid, noutput),
        "b2": 0.1 * jax.random.normal(k4, (noutput,), jnp.float32),
        "bn_gamma": jnp.ones((noutput,), jnp.float32),
        "bn_beta": jnp.zeros((noutput,), jnp.float32),
        "bn_mean": jnp.zeros((noutput,), jnp.float32),   # running_mean (fresh)
        "bn_var": jnp.ones((noutput,), jnp.float32),     # running_var  (fresh)
        "ln_w": jnp.ones((noutput,), jnp.float32),
        "ln_b": jnp.zeros((noutput,), jnp.float32),
    }


if __name__ == "__main__":
    # Small synthetic graph: 16 nodes, 8 input feats, 32 hidden, 16 output.
    N, NFEAT, NHID, NOUT, E = 16, 8, 32, 16, 40

    key = jax.random.PRNGKey(0)
    kx, ke, kw, kp = jax.random.split(key, 4)

    x = jax.random.normal(kx, (N, NFEAT), jnp.float32)
    edge_index = jax.random.randint(ke, (2, E), 0, N, jnp.int32)
    edge_weight = jax.random.uniform(kw, (E,), jnp.float32, 0.1, 1.0)

    params = init_params(kp, NFEAT, NHID, NOUT)

    out = jax.jit(gcn_forward)(params, x, edge_index, edge_weight)
    out = jax.block_until_ready(out)

    assert out.shape == (N, NOUT) and out.dtype == jnp.float32
    assert bool(jnp.all(jnp.isfinite(out)))
    print("KERNEL_OK")
</pallas_src>

<mosaic_0001>
module attributes {stable_mosaic.version = 11 : i64} {
  func.func private @main(%arg0: i32) attributes {dimension_semantics = [#tpu.dimension_semantics<core_parallel>], iteration_bounds = array<i64: 2>, tpu.core_type = #tpu.core_type<sc_scalar_subcore>, window_params = []} {
    return
  }
}

module attributes {stable_mosaic.version = 11 : i64} {
  func.func private @main(%arg0: i32) attributes {dimension_semantics = [#tpu.dimension_semantics<core_parallel>], iteration_bounds = array<i64: 2>, tpu.core_type = #tpu.core_type<sc_scalar_subcore>, window_params = []} {
    return
  }
}

module attributes {stable_mosaic.version = 11 : i64} {
  func.func @xw_kernel(%arg0: i32, %arg1: memref<128x128xbf16, #tpu.memory_space<vmem>>, %arg2: memref<128x128xbf16, #tpu.memory_space<vmem>>, %arg3: memref<128x128xbf16, #tpu.memory_space<vmem>>) attributes {dimension_semantics = [#tpu.dimension_semantics<parallel>], iteration_bounds = array<i64: 1>, scalar_prefetch = 0 : i64, scratch_operands = 0 : i64, tpu.core_type = #tpu.core_type<tc>, window_params = [{transform_indices = @transform_0, window_bounds = array<i64: 128, 128>}, {pipeline_mode = #tpu.pipeline_mode<synchronous>, transform_indices = @transform_1, window_bounds = array<i64: 128, 128>}, {transform_indices = @transform_2, window_bounds = array<i64: 128, 128>}]} {
    %c0 = arith.constant 0 : index
    %c0_0 = arith.constant 0 : index
    %0 = vector.load %arg1[%c0, %c0_0] : memref<128x128xbf16, #tpu.memory_space<vmem>>, vector<128x128xbf16>
    %c0_1 = arith.constant 0 : index
    %c0_2 = arith.constant 0 : index
    %1 = vector.load %arg2[%c0_1, %c0_2] : memref<128x128xbf16, #tpu.memory_space<vmem>>, vector<128x128xbf16>
    %cst = arith.constant dense<0.000000e+00> : vector<128x128xf32>
    %2 = tpu.matmul %0, %1, %cst {dimension_numbers = #tpu.dot_dimension_numbers<[1], [0], [0], [1], [0, 0, 1, 1], [], []>} : vector<128x128xbf16>, vector<128x128xbf16>, vector<128x128xf32> -> vector<128x128xf32>
    %3 = arith.truncf %2 : vector<128x128xf32> to vector<128x128xbf16>
    %c0_3 = arith.constant 0 : index
    %c0_4 = arith.constant 0 : index
    %4 = vector.load %arg3[%c0_3, %c0_4] : memref<128x128xbf16, #tpu.memory_space<vmem>>, vector<128x128xbf16>
    tpu.vector_store %arg3[%c0_3, %c0_4], %3 {strides = array<i32>} : memref<128x128xbf16, #tpu.memory_space<vmem>>, vector<128x128xbf16>,
    return
  }
  func.func @transform_0(%arg0: i32) -> (i32, i32) {
    %c0_i32 = arith.constant 0 : i32
    %c0_i32_0 = arith.constant 0 : i32
    return %arg0, %c0_i32 : i32, i32
  }
  func.func @transform_1(%arg0: i32) -> (i32, i32) {
    %c0_i32 = arith.constant 0 : i32
    %c0_i32_0 = arith.constant 0 : i32
    %c0_i32_1 = arith.constant 0 : i32
    return %c0_i32, %c0_i32_0 : i32, i32
  }
  func.func @transform_2(%arg0: i32) -> (i32, i32) {
    %c0_i32 = arith.constant 0 : i32
    %c0_i32_0 = arith.constant 0 : i32
    return %arg0, %c0_i32 : i32, i32
  }
}

module attributes {stable_mosaic.version = 11 : i64} {
  func.func @aggregate_relu_kernel(%arg0: i32, %arg1: i32, %arg2: memref<128x128xbf16, #tpu.memory_space<vmem>>, %arg3: memref<128x128xbf16, #tpu.memory_space<vmem>>, %arg4: memref<1x128xf32, #tpu.memory_space<vmem>>, %arg5: memref<128x128xbf16, #tpu.memory_space<vmem>>, %arg6: memref<128x128xf32, #tpu.memory_space<vmem>>) attributes {dimension_semantics = [#tpu.dimension_semantics<parallel>, #tpu.dimension_semantics<arbitrary>], iteration_bounds = array<i64: 1, 1>, scalar_prefetch = 0 : i64, scratch_operands = 1 : i64, tpu.core_type = #tpu.core_type<tc>, window_params = [{transform_indices = @transform_0, window_bounds = array<i64: 128, 128>}, {transform_indices = @transform_1, window_bounds = array<i64: 128, 128>}, {pipeline_mode = #tpu.pipeline_mode<synchronous>, transform_indices = @transform_2, window_bounds = array<i64: 1, 128>}, {transform_indices = @transform_3, window_bounds = array<i64: 128, 128>}]} {
    %c0_i32 = arith.constant 0 : i32
    %0 = arith.cmpi eq, %arg1, %c0_i32 : i32
    %1 = arith.extui %0 : i1 to i32
    %c0_i32_0 = arith.constant 0 : i32
    %2 = arith.cmpi ne, %1, %c0_i32_0 : i32
    scf.if %2 {
      %cst_10 = arith.constant 0.000000e+00 : f32
      %12 = vector.broadcast %cst_10 : f32 to vector<128x128xf32>
      %c0_11 = arith.constant 0 : index
      %c0_12 = arith.constant 0 : index
      %13 = vector.load %arg6[%c0_11, %c0_12] : memref<128x128xf32, #tpu.memory_space<vmem>>, vector<128x128xf32>
      tpu.vector_store %arg6[%c0_11, %c0_12], %12 {strides = array<i32>} : memref<128x128xf32, #tpu.memory_space<vmem>>, vector<128x128xf32>,
    } else {
    }
    %c0 = arith.constant 0 : index
    %c0_1 = arith.constant 0 : index
    %3 = vector.load %arg6[%c0, %c0_1] : memref<128x128xf32, #tpu.memory_space<vmem>>, vector<128x128xf32>
    %c0_2 = arith.constant 0 : index
    %c0_3 = arith.constant 0 : index
    %4 = vector.load %arg2[%c0_2, %c0_3] : memref<128x128xbf16, #tpu.memory_space<vmem>>, vector<128x128xbf16>
    %c0_4 = arith.constant 0 : index
    %c0_5 = arith.constant 0 : index
    %5 = vector.load %arg3[%c0_4, %c0_5] : memref<128x128xbf16, #tpu.memory_space<vmem>>, vector<128x128xbf16>
    %cst = arith.constant dense<0.000000e+00> : vector<128x128xf32>
    %6 = tpu.matmul %4, %5, %cst {dimension_numbers = #tpu.dot_dimension_numbers<[1], [0], [0], [1], [0, 0, 1, 1], [], []>} : vector<128x128xbf16>, vector<128x128xbf16>, vector<128x128xf32> -> vector<128x128xf32>
    %7 = arith.addf %3, %6 : vector<128x128xf32>
    %c0_6 = arith.constant 0 : index
    %c0_7 = arith.constant 0 : index
    %8 = vector.load %arg6[%c0_6, %c0_7] : memref<128x128xf32, #tpu.memory_space<vmem>>, vector<128x128xf32>
    tpu.vector_store %arg6[%c0_6, %c0_7], %7 {strides = array<i32>} : memref<128x128xf32, #tpu.memory_space<vmem>>, vector<128x128xf32>,
    %c0_i32_8 = arith.constant 0 : i32
    %9 = arith.cmpi eq, %arg1, %c0_i32_8 : i32
    %10 = arith.extui %9 : i1 to i32
    %c0_i32_9 = arith.constant 0 : i32
    %11 = arith.cmpi ne, %10, %c0_i32_9 : i32
    scf.if %11 {
      %c0_10 = arith.constant 0 : index
      %c0_11 = arith.constant 0 : index
      %12 = vector.load %arg6[%c0_10, %c0_11] : memref<128x128xf32, #tpu.memory_space<vmem>>, vector<128x128xf32>
      %c0_12 = arith.constant 0 : index
      %c0_13 = arith.constant 0 : index
      %13 = vector.load %arg4[%c0_12, %c0_13] : memref<1x128xf32, #tpu.memory_space<vmem>>, vector<1x128xf32>
      %14 = vector.broadcast %13 : vector<1x128xf32> to vector<128x128xf32>
      %15 = arith.addf %12, %14 : vector<128x128xf32>
      %cst_14 = arith.constant 0.000000e+00 : f32
      %16 = vector.broadcast %cst_14 : f32 to vector<128x128xf32>
      %17 = arith.maximumf %15, %16 : vector<128x128xf32>
      %18 = arith.truncf %17 : vector<128x128xf32> to vector<128x128xbf16>
      %c0_15 = arith.constant 0 : index
      %c0_16 = arith.constant 0 : index
      %19 = vector.load %arg5[%c0_15, %c0_16] : memref<128x128xbf16, #tpu.memory_space<vmem>>, vector<128x128xbf16>
      tpu.vector_store %arg5[%c0_15, %c0_16], %18 {strides = array<i32>} : memref<128x128xbf16, #tpu.memory_space<vmem>>, vector<128x128xbf16>,
    } else {
    }
    return
  }
  func.func @transform_0(%arg0: i32, %arg1: i32) -> (i32, i32) {
    %c0_i32 = arith.constant 0 : i32
    return %arg0, %arg1 : i32, i32
  }
  func.func @transform_1(%arg0: i32, %arg1: i32) -> (i32, i32) {
    %c0_i32 = arith.constant 0 : i32
    %c0_i32_0 = arith.constant 0 : i32
    return %arg1, %c0_i32 : i32, i32
  }
  func.func @transform_2(%arg0: i32, %arg1: i32) -> (i32, i32) {
    %c0_i32 = arith.constant 0 : i32
    %c0_i32_0 = arith.constant 0 : i32
    %c0_i32_1 = arith.constant 0 : i32
    return %c0_i32, %c0_i32_0 : i32, i32
  }
  func.func @transform_3(%arg0: i32, %arg1: i32) -> (i32, i32) {
    %c0_i32 = arith.constant 0 : i32
    %c0_i32_0 = arith.constant 0 : i32
    return %arg0, %c0_i32 : i32, i32
  }
}

module attributes {stable_mosaic.version = 11 : i64} {
  func.func @aggregate_relu_norm_kernel(%arg0: i32, %arg1: i32, %arg2: memref<128x128xbf16, #tpu.memory_space<vmem>>, %arg3: memref<128x128xbf16, #tpu.memory_space<vmem>>, %arg4: memref<1x128xf32, #tpu.memory_space<vmem>>, %arg5: memref<1x128xf32, #tpu.memory_space<vmem>>, %arg6: memref<1x128xf32, #tpu.memory_space<vmem>>, %arg7: memref<1x128xf32, #tpu.memory_space<vmem>>, %arg8: memref<1x128xf32, #tpu.memory_space<vmem>>, %arg9: memref<128x128xf32, #tpu.memory_space<vmem>>, %arg10: memref<128x128xf32, #tpu.memory_space<vmem>>) attributes {dimension_semantics = [#tpu.dimension_semantics<parallel>, #tpu.dimension_semantics<arbitrary>], iteration_bounds = array<i64: 1, 1>, scalar_prefetch = 0 : i64, scratch_operands = 1 : i64, tpu.core_type = #tpu.core_type<tc>, window_params = [{transform_indices = @transform_0, window_bounds = array<i64: 128, 128>}, {transform_indices = @transform_1, window_bounds = array<i64: 128, 128>}, {pipeline_mode = #tpu.pipeline_mode<synchronous>, transform_indices = @transform_2, window_bounds = array<i64: 1, 128>}, {pipeline_mode = #tpu.pipeline_mode<synchronous>, transform_indices = @transform_3, window_bounds = array<i64: 1, 128>}, {pipeline_mode = #tpu.pipeline_mode<synchronous>, transform_indices = @transform_4, window_bounds = array<i64: 1, 128>}, {pipeline_mode = #tpu.pipeline_mode<synchronous>, transform_indices = @transform_5, window_bounds = array<i64: 1, 128>}, {pipeline_mode = #tpu.pipeline_mode<synchronous>, transform_indices = @transform_6, window_bounds = array<i64: 1, 128>}, {transform_indices = @transform_7, window_bounds = array<i64: 128, 128>}]} {
    %c0_i32 = arith.constant 0 : i32
    %0 = arith.cmpi eq, %arg1, %c0_i32 : i32
    %1 = arith.extui %0 : i1 to i32
    %c0_i32_0 = arith.constant 0 : i32
    %2 = arith.cmpi ne, %1, %c0_i32_0 : i32
    scf.if %2 {
      %cst_10 = arith.constant 0.000000e+00 : f32
      %12 = vector.broadcast %cst_10 : f32 to vector<128x128xf32>
      %c0_11 = arith.constant 0 : index
      %c0_12 = arith.constant 0 : index
      %13 = vector.load %arg10[%c0_11, %c0_12] : memref<128x128xf32, #tpu.memory_space<vmem>>, vector<128x128xf32>
      tpu.vector_store %arg10[%c0_11, %c0_12], %12 {strides = array<i32>} : memref<128x128xf32, #tpu.memory_space<vmem>>, vector<128x128xf32>,
    } else {
    }
    %c0 = arith.constant 0 : index
    %c0_1 = arith.constant 0 : index
    %3 = vector.load %arg10[%c0, %c0_1] : memref<128x128xf32, #tpu.memory_space<vmem>>, vector<128x128xf32>
    %c0_2 = arith.constant 0 : index
    %c0_3 = arith.constant 0 : index
    %4 = vector.load %arg2[%c0_2, %c0_3] : memref<128x128xbf16, #tpu.memory_space<vmem>>, vector<128x128xbf16>
    %c0_4 = arith.constant 0 : index
    %c0_5 = arith.constant 0 : index
    %5 = vector.load %arg3[%c0_4, %c0_5] : memref<128x128xbf16, #tpu.memory_space<vmem>>, vector<128x128xbf16>
    %cst = arith.constant dense<0.000000e+00> : vector<128x128xf32>
    %6 = tpu.matmul %4, %5, %cst {dimension_numbers = #tpu.dot_dimension_numbers<[1], [0], [0], [1], [0, 0, 1, 1], [], []>} : vector<128x128xbf16>, vector<128x128xbf16>, vector<128x128xf32> -> vector<128x128xf32>
    %7 = arith.addf %3, %6 : vector<128x128xf32>
    %c0_6 = arith.constant 0 : index
    %c0_7 = arith.constant 0 : index
    %8 = vector.load %arg10[%c0_6, %c0_7] : memref<128x128xf32, #tpu.memory_space<vmem>>, vector<128x128xf32>
    tpu.vector_store %arg10[%c0_6, %c0_7], %7 {strides = array<i32>} : memref<128x128xf32, #tpu.memory_space<vmem>>, vector<128x128xf32>,
    %c0_i32_8 = arith.constant 0 : i32
    %9 = arith.cmpi eq, %arg1, %c0_i32_8 : i32
    %10 = arith.extui %9 : i1 to i32
    %c0_i32_9 = arith.constant 0 : i32
    %11 = arith.cmpi ne, %10, %c0_i32_9 : i32
    scf.if %11 {
      %c0_10 = arith.constant 0 : index
      %c0_11 = arith.constant 0 : index
      %12 = vector.load %arg10[%c0_10, %c0_11] : memref<128x128xf32, #tpu.memory_space<vmem>>, vector<128x128xf32>
      %c0_12 = arith.constant 0 : index
      %c0_13 = arith.constant 0 : index
      %13 = vector.load %arg4[%c0_12, %c0_13] : memref<1x128xf32, #tpu.memory_space<vmem>>, vector<1x128xf32>
      %14 = vector.broadcast %13 : vector<1x128xf32> to vector<128x128xf32>
      %15 = arith.addf %12, %14 : vector<128x128xf32>
      %cst_14 = arith.constant 0.000000e+00 : f32
      %16 = vector.broadcast %cst_14 : f32 to vector<128x128xf32>
      %17 = arith.maximumf %15, %16 : vector<128x128xf32>
      %c0_15 = arith.constant 0 : index
      %c0_16 = arith.constant 0 : index
      %18 = vector.load %arg5[%c0_15, %c0_16] : memref<1x128xf32, #tpu.memory_space<vmem>>, vector<1x128xf32>
      %19 = vector.broadcast %18 : vector<1x128xf32> to vector<128x128xf32>
      %20 = arith.mulf %17, %19 : vector<128x128xf32>
      %c0_17 = arith.constant 0 : index
      %c0_18 = arith.constant 0 : index
      %21 = vector.load %arg6[%c0_17, %c0_18] : memref<1x128xf32, #tpu.memory_space<vmem>>, vector<1x128xf32>
      %22 = vector.broadcast %21 : vector<1x128xf32> to vector<128x128xf32>
      %23 = arith.addf %20, %22 : vector<128x128xf32>
      %cst_19 = arith.constant dense<0.000000e+00> : vector<128xf32>
      %24 = vector.multi_reduction <add>, %23, %cst_19 [1] : vector<128x128xf32> to vector<128xf32>
      %25 = vector.shape_cast %24 : vector<128xf32> to vector<128x1xf32>
      %cst_20 = arith.constant 6.250000e-02 : f32
      %26 = vector.broadcast %cst_20 : f32 to vector<128x1xf32>
      %27 = arith.mulf %25, %26 : vector<128x1xf32>
      %28 = arith.mulf %23, %23 : vector<128x128xf32>
      %cst_21 = arith.constant dense<0.000000e+00> : vector<128xf32>
      %29 = vector.multi_reduction <add>, %28, %cst_21 [1] : vector<128x128xf32> to vector<128xf32>
      %30 = vector.shape_cast %29 : vector<128xf32> to vector<128x1xf32>
      %cst_22 = arith.constant 6.250000e-02 : f32
      %31 = vector.broadcast %cst_22 : f32 to vector<128x1xf32>
      %32 = arith.mulf %30, %31 : vector<128x1xf32>
      %33 = arith.mulf %27, %27 : vector<128x1xf32>
      %34 = arith.subf %32, %33 : vector<128x1xf32>
      %35 = vector.broadcast %27 : vector<128x1xf32> to vector<128x128xf32>
      %36 = arith.subf %23, %35 : vector<128x128xf32>
      %cst_23 = arith.constant 9.99999974E-6 : f32
      %37 = vector.broadcast %cst_23 : f32 to vector<128x1xf32>
      %38 = arith.addf %34, %37 : vector<128x1xf32>
      %39 = math.rsqrt %38 : vector<128x1xf32>
      %40 = vector.broadcast %39 : vector<128x1xf32> to vector<128x128xf32>
      %41 = arith.mulf %36, %40 : vector<128x128xf32>
      %c0_24 = arith.constant 0 : index
      %c0_25 = arith.constant 0 : index
      %42 = vector.load %arg7[%c0_24, %c0_25] : memref<1x128xf32, #tpu.memory_space<vmem>>, vector<1x128xf32>
      %43 = vector.broadcast %42 : vector<1x128xf32> to vector<128x128xf32>
      %44 = arith.mulf %41, %43 : vector<128x128xf32>
      %c0_26 = arith.constant 0 : index
      %c0_27 = arith.constant 0 : index
      %45 = vector.load %arg8[%c0_26, %c0_27] : memref<1x128xf32, #tpu.memory_space<vmem>>, vector<1x128xf32>
      %46 = vector.broadcast %45 : vector<1x128xf32> to vector<128x128xf32>
      %47 = arith.addf %44, %46 : vector<128x128xf32>
      %c0_28 = arith.constant 0 : index
      %c0_29 = arith.constant 0 : index
      %48 = vector.load %arg9[%c0_28, %c0_29] : memref<128x128xf32, #tpu.memory_space<vmem>>, vector<128x128xf32>
      tpu.vector_store %arg9[%c0_28, %c0_29], %47 {strides = array<i32>} : memref<128x128xf32, #tpu.memory_space<vmem>>, vector<128x128xf32>,
    } else {
    }
    return
  }
  func.func @transform_0(%arg0: i32, %arg1: i32) -> (i32, i32) {
    %c0_i32 = arith.constant 0 : i32
    return %arg0, %arg1 : i32, i32
  }
  func.func @transform_1(%arg0: i32, %arg1: i32) -> (i32, i32) {
    %c0_i32 = arith.constant 0 : i32
    %c0_i32_0 = arith.constant 0 : i32
    return %arg1, %c0_i32 : i32, i32
  }
  func.func @transform_2(%arg0: i32, %arg1: i32) -> (i32, i32) {
    %c0_i32 = arith.constant 0 : i32
    %c0_i32_0 = arith.constant 0 : i32
    %c0_i32_1 = arith.constant 0 : i32
    return %c0_i32, %c0_i32_0 : i32, i32
  }
  func.func @transform_3(%arg0: i32, %arg1: i32) -> (i32, i32) {
    %c0_i32 = arith.constant 0 : i32
    %c0_i32_0 = arith.constant 0 : i32
    %c0_i32_1 = arith.constant 0 : i32
    return %c0_i32, %c0_i32_0 : i32, i32
  }
  func.func @transform_4(%arg0: i32, %arg1: i32) -> (i32, i32) {
    %c0_i32 = arith.constant 0 : i32
    %c0_i32_0 = arith.constant 0 : i32
    %c0_i32_1 = arith.constant 0 : i32
    return %c0_i32, %c0_i32_0 : i32, i32
  }
  func.func @transform_5(%arg0: i32, %arg1: i32) -> (i32, i32) {
    %c0_i32 = arith.constant 0 : i32
    %c0_i32_0 = arith.constant 0 : i32
    %c0_i32_1 = arith.constant 0 : i32
    return %c0_i32, %c0_i32_0 : i32, i32
  }
  func.func @transform_6(%arg0: i32, %arg1: i32) -> (i32, i32) {
    %c0_i32 = arith.constant 0 : i32
    %c0_i32_0 = arith.constant 0 : i32
    %c0_i32_1 = arith.constant 0 : i32
    return %c0_i32, %c0_i32_0 : i32, i32
  }
  func.func @transform_7(%arg0: i32, %arg1: i32) -> (i32, i32) {
    %c0_i32 = arith.constant 0 : i32
    %c0_i32_0 = arith.constant 0 : i32
    return %arg0, %c0_i32 : i32, i32
  }
}

</mosaic_0001>

<llo_original>
// kernel: gcn_forward.4
$region0: #{gcn_forward.4}
  #allocation0 [shape = 'u32[]', space=smem, size = 0x4, offset = 0x4, fixed_abs, tag = 'smem constant byte address 0x4 - core index']
  #allocation1 [shape = 'u32[144,128]{1,0:T(1,128)}', space=vmem, size = 0x12000, scoped, tag = 'internal scratch']
  %s0 = inlined_call_operand.vmem [shape: bf16[128,128], index: 0, kind: input, shape index: {}]
  %s1 = inlined_call_operand.vmem [shape: bf16[128,128], index: 1, kind: input, shape index: {}]
  %s2 = inlined_call_operand.vmem [shape: bf16[128,128], index: 2, kind: output, shape index: {}]
  %s3 = sld [smem:[#allocation0]]
  $region18: #{gcn_forward.4} parent=0
    _
  %s5 = ssub.s32 1, %s3
  %s6 = scalar_select 0, %s5, %s3
  // Predicated region
  $region2: #{gcn_forward.4} parent=0 // pred_check
    _
  $region3: #{gcn_forward.4} parent=0 // pred_check_branch
    %8 = sbr.rel (0) target = $region5
  $region4: #{gcn_forward.4} parent=0 // pred_region
    _
  $region5: #{gcn_forward.4} parent=0 // pred_fallthru
    _
  // Predicated region
  $region6: #{gcn_forward.4} parent=0 // pred_check
    _
  $region7: #{gcn_forward.4} parent=0 // pred_check_branch
    %10 = sbr.rel (0) target = $region9
  $region8: #{gcn_forward.4} parent=0 // pred_region
    _
  $region9: #{gcn_forward.4} parent=0 // pred_fallthru
    _
  %v12 = vld [vmem:[%s0] sm:$0xf]
  %v13 = vld [vmem:[%s0 + $0x4] sm:$0xf]
  %v14 = vld [vmem:[%s0 + $0x8] sm:$0xf]
  %v15 = vld [vmem:[%s0 + $0xc] sm:$0xf]
  %v16 = vld [vmem:[%s0 + $0x10] sm:$0xf]
  %v17 = vld [vmem:[%s0 + $0x14] sm:$0xf]
  %v18 = vld [vmem:[%s0 + $0x18] sm:$0xf]
  %v19 = vld [vmem:[%s0 + $0x1c] sm:$0xf]
  %v20 = vld [vmem:[%s0 + $0x20] sm:$0xf]
  %v21 = vld [vmem:[%s0 + $0x24] sm:$0xf]
  %v22 = vld [vmem:[%s0 + $0x28] sm:$0xf]
  %v23 = vld [vmem:[%s0 + $0x2c] sm:$0xf]
  %v24 = vld [vmem:[%s0 + $0x30] sm:$0xf]
  %v25 = vld [vmem:[%s0 + $0x34] sm:$0xf]
  %v26 = vld [vmem:[%s0 + $0x38] sm:$0xf]
  %v27 = vld [vmem:[%s0 + $0x3c] sm:$0xf]
  %v28 = vld [vmem:[%s1] sm:$0xf]
  %v29 = vld [vmem:[%s1 + $0x4] sm:$0xf]
  %v30 = vld [vmem:[%s1 + $0x8] sm:$0xf]
  %v31 = vld [vmem:[%s1 + $0xc] sm:$0xf]
  %v32 = vld [vmem:[%s1 + $0x10] sm:$0xf]
  %v33 = vld [vmem:[%s1 + $0x14] sm:$0xf]
  %v34 = vld [vmem:[%s1 + $0x18] sm:$0xf]
  %v35 = vld [vmem:[%s1 + $0x1c] sm:$0xf]
  %v36 = vld [vmem:[%s1 + $0x20] sm:$0xf]
  %v37 = vld [vmem:[%s1 + $0x24] sm:$0xf]
  %v38 = vld [vmem:[%s1 + $0x28] sm:$0xf]
  %v39 = vld [vmem:[%s1 + $0x2c] sm:$0xf]
  %v40 = vld [vmem:[%s1 + $0x30] sm:$0xf]
  %v41 = vld [vmem:[%s1 + $0x34] sm:$0xf]
  %v42 = vld [vmem:[%s1 + $0x38] sm:$0xf]
  %v43 = vld [vmem:[%s1 + $0x3c] sm:$0xf]
  %v60 = vunpack.c.l.b16 %v12
  %v61 = vunpack.c.l.b16 %v13
  %v62 = vunpack.c.l.b16 %v14
  %v63 = vunpack.c.l.b16 %v15
  %v64 = vunpack.c.l.b16 %v16
  %v65 = vunpack.c.l.b16 %v17
  %v66 = vunpack.c.l.b16 %v18
  %v67 = vunpack.c.l.b16 %v19
  %v68 = vunpack.c.l.b16 %v20
  %v69 = vunpack.c.l.b16 %v21
  %v70 = vunpack.c.l.b16 %v22
  %v71 = vunpack.c.l.b16 %v23
  %v72 = vunpack.c.l.b16 %v24
  %v73 = vunpack.c.l.b16 %v25
  %v74 = vunpack.c.l.b16 %v26
  %v75 = vunpack.c.l.b16 %v27
  %v76 = vpack.c.b16 %v61, %v60
  %v77 = vpack.c.b16 %v63, %v62
  %v78 = vpack.c.b16 %v65, %v64
  %v79 = vpack.c.b16 %v67, %v66
  %v80 = vpack.c.b16 %v69, %v68
  %v81 = vpack.c.b16 %v71, %v70
  %v82 = vpack.c.b16 %v73, %v72
  %v83 = vpack.c.b16 %v75, %v74
  %v108 = vunpack.c.l.b16 %v28
  %v109 = vunpack.c.l.b16 %v29
  %v110 = vunpack.c.l.b16 %v30
  %v111 = vunpack.c.l.b16 %v31
  %v112 = vunpack.c.l.b16 %v32
  %v113 = vunpack.c.l.b16 %v33
  %v114 = vunpack.c.l.b16 %v34
  %v115 = vunpack.c.l.b16 %v35
  %v116 = vunpack.c.l.b16 %v36
  %v117 = vunpack.c.l.b16 %v37
  %v118 = vunpack.c.l.b16 %v38
  %v119 = vunpack.c.l.b16 %v39
  %v120 = vunpack.c.l.b16 %v40
  %v121 = vunpack.c.l.b16 %v41
  %v122 = vunpack.c.l.b16 %v42
  %v123 = vunpack.c.l.b16 %v43
  %v124 = vpack.c.b16 %v109, %v108
  %v125 = vpack.c.b16 %v111, %v110
  %v126 = vpack.c.b16 %v113, %v112
  %v127 = vpack.c.b16 %v115, %v114
  %v128 = vpack.c.b16 %v117, %v116
  %v129 = vpack.c.b16 %v119, %v118
  %v130 = vpack.c.b16 %v121, %v120
  %v131 = vpack.c.b16 %v123, %v122
  %140 = vmatprep.subr.bf16.mxu0 0
  %141 = vmatpush1.bf16.msra.mxu0 %v131
  %142 = vmatprep.subr.bf16.mxu0 0
  %143 = vmatpush1.bf16.msra.mxu0 %v130
  %144 = vmatprep.subr.bf16.mxu0 0
  %145 = vmatpush1.bf16.msra.mxu0 %v129
  %146 = vmatprep.subr.bf16.mxu0 0
  %147 = vmatpush1.bf16.msra.mxu0 %v128
  %148 = vmatprep.subr.bf16.mxu0 0
  %149 = vmatpush1.bf16.msra.mxu0 %v127
  %150 = vmatprep.subr.bf16.mxu0 0
  %151 = vmatpush1.bf16.msra.mxu0 %v126
  %152 = vmatprep.subr.bf16.mxu0 0
  %153 = vmatpush1.bf16.msra.mxu0 %v125
  %154 = vmatprep.subr.bf16.mxu0 0
  %155 = vmatpush1.bf16.msra.mxu0 %v124
  %156 = vmatprep.subr.bf16.mxu0 0
  %157 = vmatpush2.bf16.msra.mxu0 0
  %158 = vmatprep.subr.bf16.mxu0 0
  %159 = vmatpush2.bf16.msra.mxu0 0
  %160 = vmatprep.subr.bf16.mxu0 0
  %161 = vmatpush2.bf16.msra.mxu0 0
  %162 = vmatprep.subr.bf16.mxu0 0
  %163 = vmatpush2.bf16.msra.mxu0 0
  %164 = vmatprep.subr.bf16.mxu0 0
  %165 = vmatpush2.bf16.msra.mxu0 0
  %166 = vmatprep.subr.bf16.mxu0 0
  %167 = vmatpush2.bf16.msra.mxu0 0
  %168 = vmatprep.subr.bf16.mxu0 0
  %169 = vmatpush2.bf16.msra.mxu0 0
  %170 = vmatprep.subr.bf16.mxu0 0
  %171 = vmatpush2.bf16.msra.mxu0 0
  %172 = vmatprep.mubr.bf16.mxu0 0
  %173 = vmatmul.mubr.bf16.gmra.mxu0 %v76
  %v174 = vpop.f32.mrf.mxu0
  %v175 = vadd.f32 0.0, %v174
  %v176 = vpop.f32.mrf.mxu0
  %v177 = vpop.f32.mrf.mxu0
  %v178 = vadd.f32 0.0, %v177
  %v179 = vpop.f32.mrf.mxu0
  %180 = vmatprep.mubr.bf16.mxu0 0
  %181 = vmatmul.mubr.bf16.gmra.mxu0 %v77
  %v182 = vpop.f32.mrf.mxu0
  %v183 = vadd.f32 0.0, %v182
  %v184 = vpop.f32.mrf.mxu0
  %v185 = vpop.f32.mrf.mxu0
  %v186 = vadd.f32 0.0, %v185
  %v187 = vpop.f32.mrf.mxu0
  %188 = vmatprep.mubr.bf16.mxu0 0
  %189 = vmatmul.mubr.bf16.gmra.mxu0 %v78
  %v190 = vpop.f32.mrf.mxu0
  %v191 = vadd.f32 0.0, %v190
  %v192 = vpop.f32.mrf.mxu0
  %v193 = vpop.f32.mrf.mxu0
  %v194 = vadd.f32 0.0, %v193
  %v195 = vpop.f32.mrf.mxu0
  %196 = vmatprep.mubr.bf16.mxu0 0
  %197 = vmatmul.mubr.bf16.gmra.mxu0 %v79
  %v198 = vpop.f32.mrf.mxu0
  %v199 = vadd.f32 0.0, %v198
  %v200 = vpop.f32.mrf.mxu0
  %v201 = vpop.f32.mrf.mxu0
  %v202 = vadd.f32 0.0, %v201
  %v203 = vpop.f32.mrf.mxu0
  %204 = vmatprep.mubr.bf16.mxu0 0
  %205 = vmatmul.mubr.bf16.gmra.mxu0 %v80
  %v206 = vpop.f32.mrf.mxu0
  %v207 = vadd.f32 0.0, %v206
  %v208 = vpop.f32.mrf.mxu0
  %v209 = vpop.f32.mrf.mxu0
  %v210 = vadd.f32 0.0, %v209
  %v211 = vpop.f32.mrf.mxu0
  %212 = vmatprep.mubr.bf16.mxu0 0
  %213 = vmatmul.mubr.bf16.gmra.mxu0 %v81
  %v214 = vpop.f32.mrf.mxu0
  %v215 = vadd.f32 0.0, %v214
  %v216 = vpop.f32.mrf.mxu0
  %v217 = vpop.f32.mrf.mxu0
  %v218 = vadd.f32 0.0, %v217
  %v219 = vpop.f32.mrf.mxu0
  %220 = vmatprep.mubr.bf16.mxu0 0
  %221 = vmatmul.mubr.bf16.gmra.mxu0 %v82
  %v222 = vpop.f32.mrf.mxu0
  %v223 = vadd.f32 0.0, %v222
  %v224 = vpop.f32.mrf.mxu0
  %v225 = vpop.f32.mrf.mxu0
  %v226 = vadd.f32 0.0, %v225
  %v227 = vpop.f32.mrf.mxu0
  %228 = vmatprep.mubr.bf16.mxu0 0
  %229 = vmatmul.mubr.bf16.gmra.mxu0 %v83
  %v230 = vpop.f32.mrf.mxu0
  %v231 = vadd.f32 0.0, %v230
  %v232 = vpop.f32.mrf.mxu0
  %v233 = vpop.f32.mrf.mxu0
  %v234 = vadd.f32 0.0, %v233
  %v235 = vpop.f32.mrf.mxu0
  %236 = vdwg.mxu0
  %v237 = vpack.c.bf16 %v178, %v175
  %v238 = vpack.c.bf16 %v186, %v183
  %v239 = vpack.c.bf16 %v194, %v191
  %v240 = vpack.c.bf16 %v202, %v199
  %v241 = vpack.c.bf16 %v210, %v207
  %v242 = vpack.c.bf16 %v218, %v215
  %v243 = vpack.c.bf16 %v226, %v223
  %v244 = vpack.c.bf16 %v234, %v231
  %v253 = vunpack.c.l.b16 %v237
  %v254 = vunpack.c.h.b16 %v237
  %v255 = vunpack.c.l.b16 %v238
  %v256 = vunpack.c.h.b16 %v238
  %v257 = vunpack.c.l.b16 %v239
  %v258 = vunpack.c.h.b16 %v239
  %v259 = vunpack.c.l.b16 %v240
  %v260 = vunpack.c.h.b16 %v240
  %v261 = vunpack.c.l.b16 %v241
  %v262 = vunpack.c.h.b16 %v241
  %v263 = vunpack.c.l.b16 %v242
  %v264 = vunpack.c.h.b16 %v242
  %v265 = vunpack.c.l.b16 %v243
  %v266 = vunpack.c.h.b16 %v243
  %v267 = vunpack.c.l.b16 %v244
  %v268 = vunpack.c.h.b16 %v244
  %v269 = vpack.c.b16 %v253, %v253
  %v270 = vpack.c.b16 %v254, %v254
  %v271 = vpack.c.b16 %v255, %v255
  %v272 = vpack.c.b16 %v256, %v256
  %v273 = vpack.c.b16 %v257, %v257
  %v274 = vpack.c.b16 %v258, %v258
  %v275 = vpack.c.b16 %v259, %v259
  %v276 = vpack.c.b16 %v260, %v260
  %v277 = vpack.c.b16 %v261, %v261
  %v278 = vpack.c.b16 %v262, %v262
  %v279 = vpack.c.b16 %v263, %v263
  %v280 = vpack.c.b16 %v264, %v264
  %v281 = vpack.c.b16 %v265, %v265
  %v282 = vpack.c.b16 %v266, %v266
  %v283 = vpack.c.b16 %v267, %v267
  %v284 = vpack.c.b16 %v268, %v268
  %301 = vst [vmem:[%s2] sm:$0xf] %v269
  %302 = vst [vmem:[%s2 + $0x4] sm:$0xf] %v270
  %303 = vst [vmem:[%s2 + $0x8] sm:$0xf] %v271
  %304 = vst [vmem:[%s2 + $0xc] sm:$0xf] %v272
  %305 = vst [vmem:[%s2 + $0x10] sm:$0xf] %v273
  %306 = vst [vmem:[%s2 + $0x14] sm:$0xf] %v274
  %307 = vst [vmem:[%s2 + $0x18] sm:$0xf] %v275
  %308 = vst [vmem:[%s2 + $0x1c] sm:$0xf] %v276
  %309 = vst [vmem:[%s2 + $0x20] sm:$0xf] %v277
  %310 = vst [vmem:[%s2 + $0x24] sm:$0xf] %v278
  %311 = vst [vmem:[%s2 + $0x28] sm:$0xf] %v279
  %312 = vst [vmem:[%s2 + $0x2c] sm:$0xf] %v280
  %313 = vst [vmem:[%s2 + $0x30] sm:$0xf] %v281
  %314 = vst [vmem:[%s2 + $0x34] sm:$0xf] %v282
  %315 = vst [vmem:[%s2 + $0x38] sm:$0xf] %v283
  %316 = vst [vmem:[%s2 + $0x3c] sm:$0xf] %v284
  // Predicated region
  $region10: #{gcn_forward.4} parent=0 // pred_check
    _
  $region11: #{gcn_forward.4} parent=0 // pred_check_branch
    %318 = sbr.rel (0) target = $region13
  $region12: #{gcn_forward.4} parent=0 // pred_region
    _
  $region13: #{gcn_forward.4} parent=0 // pred_fallthru
    _
  // Predicated region
  $region14: #{gcn_forward.4} parent=0 // pred_check
    _
  $region15: #{gcn_forward.4} parent=0 // pred_check_branch
    %320 = sbr.rel (0) target = $region17
  $region16: #{gcn_forward.4} parent=0 // pred_region
    _
  $region17: #{gcn_forward.4} parent=0 // pred_fallthru
    _

// kernel: gcn_forward.5
$region0: #{gcn_forward.5}
  #allocation0 [shape = 'u32[]', space=smem, size = 0x4, offset = 0x4, fixed_abs, tag = 'smem constant byte address 0x4 - core index']
  #allocation1 [shape = 'u32[144,128]{1,0:T(1,128)}', space=vmem, size = 0x12000, scoped, tag = 'internal scratch']
  #allocation2 [shape = 'f32[128,128]{1,0:T(8,128)}', space=vmem, size = 0x10000, scoped, tag = 'scratch operand']
  %s0 = inlined_call_operand.vmem [shape: bf16[128,128], index: 0, kind: input, shape index: {}]
  %s1 = inlined_call_operand.vmem [shape: bf16[128,128], index: 1, kind: input, shape index: {}]
  %s2 = inlined_call_operand.vmem [shape: f32[1,128], index: 2, kind: input, shape index: {}]
  %s3 = inlined_call_operand.vmem [shape: bf16[128,128], index: 3, kind: output, shape index: {}]
  %s4 = sld [smem:[#allocation0]]
  $region30: #{gcn_forward.5} parent=0
    _
  %s6 = ssub.s32 1, %s4
  %s7 = scalar_select 0, %s6, %s4
  // Predicated region
  $region2: #{gcn_forward.5} parent=0 // pred_check
    _
  $region3: #{gcn_forward.5} parent=0 // pred_check_branch
    %9 = sbr.rel (0) target = $region5
  $region4: #{gcn_forward.5} parent=0 // pred_region
    _
  $region5: #{gcn_forward.5} parent=0 // pred_fallthru
    _
  // Predicated region
  $region6: #{gcn_forward.5} parent=0 // pred_check
    _
  $region7: #{gcn_forward.5} parent=0 // pred_check_branch
    %11 = sbr.rel (0) target = $region9
  $region8: #{gcn_forward.5} parent=0 // pred_region
    _
  $region9: #{gcn_forward.5} parent=0 // pred_fallthru
    _
  // Predicated region
  $region10: #{gcn_forward.5} parent=0 // pred_check
    _
  $region11: #{gcn_forward.5} parent=0 // pred_check_branch
    %13 = sbr.rel (0) target = $region13
  $region12: #{gcn_forward.5} parent=0 // pred_region
    _
  $region13: #{gcn_forward.5} parent=0 // pred_fallthru
    _
  %p15 = scmp.eq.s32.totalorder 0, 0
  // Predicated region
  $region14: #{gcn_forward.5} parent=0 // pred_check
    %p16 = pneg %p15
  $region15: #{gcn_forward.5} parent=0 // pred_check_branch
    %18 = sbr.rel (%p16) target = $region17
  $region16: #{gcn_forward.5} parent=0 // pred_region
    %19 = vst [vmem:[#allocation2] sm:$0xff] 0.0
    %20 = vst [vmem:[#allocation2 + $0x8] sm:$0xff] 0.0
    %21 = vst [vmem:[#allocation2 + $0x10] sm:$0xff] 0.0
    %22 = vst [vmem:[#allocation2 + $0x18] sm:$0xff] 0.0
    %23 = vst [vmem:[#allocation2 + $0x20] sm:$0xff] 0.0
    %24 = vst [vmem:[#allocation2 + $0x28] sm:$0xff] 0.0
    %25 = vst [vmem:[#allocation2 + $0x30] sm:$0xff] 0.0
    %26 = vst [vmem:[#allocation2 + $0x38] sm:$0xff] 0.0
    %27 = vst [vmem:[#allocation2 + $0x40] sm:$0xff] 0.0
    %28 = vst [vmem:[#allocation2 + $0x48] sm:$0xff] 0.0
    %29 = vst [vmem:[#allocation2 + $0x50] sm:$0xff] 0.0
    %30 = vst [vmem:[#allocation2 + $0x58] sm:$0xff] 0.0
    %31 = vst [vmem:[#allocation2 + $0x60] sm:$0xff] 0.0
    %32 = vst [vmem:[#allocation2 + $0x68] sm:$0xff] 0.0
    %33 = vst [vmem:[#allocation2 + $0x70] sm:$0xff] 0.0
    %34 = vst [vmem:[#allocation2 + $0x78] sm:$0xff] 0.0
  $region17: #{gcn_forward.5} parent=0 // pred_fallthru
    _
  %v35 = vld [vmem:[#allocation2] sm:$0xff]
  %v36 = vld [vmem:[#allocation2 + $0x8] sm:$0xff]
  %v37 = vld [vmem:[#allocation2 + $0x10] sm:$0xff]
  %v38 = vld [vmem:[#allocation2 + $0x18] sm:$0xff]
  %v39 = vld [vmem:[#allocation2 + $0x20] sm:$0xff]
  %v40 = vld [vmem:[#allocation2 + $0x28] sm:$0xff]
  %v41 = vld [vmem:[#allocation2 + $0x30] sm:$0xff]
  %v42 = vld [vmem:[#allocation2 + $0x38] sm:$0xff]
  %v43 = vld [vmem:[#allocation2 + $0x40] sm:$0xff]
  %v44 = vld [vmem:[#allocation2 + $0x48] sm:$0xff]
  %v45 = vld [vmem:[#allocation2 + $0x50] sm:$0xff]
  %v46 = vld [vmem:[#allocation2 + $0x58] sm:$0xff]
  %v47 = vld [vmem:[#allocation2 + $0x60] sm:$0xff]
  %v48 = vld [vmem:[#allocation2 + $0x68] sm:$0xff]
  %v49 = vld [vmem:[#allocation2 + $0x70] sm:$0xff]
  %v50 = vld [vmem:[#allocation2 + $0x78] sm:$0xff]
  %v51 = vld [vmem:[%s0] sm:$0xf]
  %v52 = vld [vmem:[%s0 + $0x4] sm:$0xf]
  %v53 = vld [vmem:[%s0 + $0x8] sm:$0xf]
  %v54 = vld [vmem:[%s0 + $0xc] sm:$0xf]
  %v55 = vld [vmem:[%s0 + $0x10] sm:$0xf]
  %v56 = vld [vmem:[%s0 + $0x14] sm:$0xf]
  %v57 = vld [vmem:[%s0 + $0x18] sm:$0xf]
  %v58 = vld [vmem:[%s0 + $0x1c] sm:$0xf]
  %v59 = vld [vmem:[%s0 + $0x20] sm:$0xf]
  %v60 = vld [vmem:[%s0 + $0x24] sm:$0xf]
  %v61 = vld [vmem:[%s0 + $0x28] sm:$0xf]
  %v62 = vld [vmem:[%s0 + $0x2c] sm:$0xf]
  %v63 = vld [vmem:[%s0 + $0x30] sm:$0xf]
  %v64 = vld [vmem:[%s0 + $0x34] sm:$0xf]
  %v65 = vld [vmem:[%s0 + $0x38] sm:$0xf]
  %v66 = vld [vmem:[%s0 + $0x3c] sm:$0xf]
  %v67 = vld [vmem:[%s1] sm:$0xf]
  %v68 = vld [vmem:[%s1 + $0x4] sm:$0xf]
  %v69 = vld [vmem:[%s1 + $0x8] sm:$0xf]
  %v70 = vld [vmem:[%s1 + $0xc] sm:$0xf]
  %v71 = vld [vmem:[%s1 + $0x10] sm:$0xf]
  %v72 = vld [vmem:[%s1 + $0x14] sm:$0xf]
  %v73 = vld [vmem:[%s1 + $0x18] sm:$0xf]
  %v74 = vld [vmem:[%s1 + $0x1c] sm:$0xf]
  %v75 = vld [vmem:[%s1 + $0x20] sm:$0xf]
  %v76 = vld [vmem:[%s1 + $0x24] sm:$0xf]
  %v77 = vld [vmem:[%s1 + $0x28] sm:$0xf]
  %v78 = vld [vmem:[%s1 + $0x2c] sm:$0xf]
  %v79 = vld [vmem:[%s1 + $0x30] sm:$0xf]
  %v80 = vld [vmem:[%s1 + $0x34] sm:$0xf]
  %v81 = vld [vmem:[%s1 + $0x38] sm:$0xf]
  %v82 = vld [vmem:[%s1 + $0x3c] sm:$0xf]
  %v99 = vunpack.c.l.b16 %v51
  %v100 = vunpack.c.l.b16 %v52
  %v101 = vunpack.c.l.b16 %v53
  %v102 = vunpack.c.l.b16 %v54
  %v103 = vunpack.c.l.b16 %v55
  %v104 = vunpack.c.l.b16 %v56
  %v105 = vunpack.c.l.b16 %v57
  %v106 = vunpack.c.l.b16 %v58
  %v107 = vunpack.c.l.b16 %v59
  %v108 = vunpack.c.l.b16 %v60
  %v109 = vunpack.c.l.b16 %v61
  %v110 = vunpack.c.l.b16 %v62
  %v111 = vunpack.c.l.b16 %v63
  %v112 = vunpack.c.l.b16 %v64
  %v113 = vunpack.c.l.b16 %v65
  %v114 = vunpack.c.l.b16 %v66
  %v115 = vpack.c.b16 %v100, %v99
  %v116 = vpack.c.b16 %v102, %v101
  %v117 = vpack.c.b16 %v104, %v103
  %v118 = vpack.c.b16 %v106, %v105
  %v119 = vpack.c.b16 %v108, %v107
  %v120 = vpack.c.b16 %v110, %v109
  %v121 = vpack.c.b16 %v112, %v111
  %v122 = vpack.c.b16 %v114, %v113
  %v147 = vunpack.c.l.b16 %v67
  %v148 = vunpack.c.l.b16 %v68
  %v149 = vunpack.c.l.b16 %v69
  %v150 = vunpack.c.l.b16 %v70
  %v151 = vunpack.c.l.b16 %v71
  %v152 = vunpack.c.l.b16 %v72
  %v153 = vunpack.c.l.b16 %v73
  %v154 = vunpack.c.l.b16 %v74
  %v155 = vunpack.c.l.b16 %v75
  %v156 = vunpack.c.l.b16 %v76
  %v157 = vunpack.c.l.b16 %v77
  %v158 = vunpack.c.l.b16 %v78
  %v159 = vunpack.c.l.b16 %v79
  %v160 = vunpack.c.l.b16 %v80
  %v161 = vunpack.c.l.b16 %v81
  %v162 = vunpack.c.l.b16 %v82
  %v163 = vpack.c.b16 %v148, %v147
  %v164 = vpack.c.b16 %v150, %v149
  %v165 = vpack.c.b16 %v152, %v151
  %v166 = vpack.c.b16 %v154, %v153
  %v167 = vpack.c.b16 %v156, %v155
  %v168 = vpack.c.b16 %v158, %v157
  %v169 = vpack.c.b16 %v160, %v159
  %v170 = vpack.c.b16 %v162, %v161
  %179 = vmatprep.subr.bf16.mxu0 0
  %180 = vmatpush1.bf16.msra.mxu0 %v170
  %181 = vmatprep.subr.bf16.mxu0 0
  %182 = vmatpush1.bf16.msra.mxu0 %v169
  %183 = vmatprep.subr.bf16.mxu0 0
  %184 = vmatpush1.bf16.msra.mxu0 %v168
  %185 = vmatprep.subr.bf16.mxu0 0
  %186 = vmatpush1.bf16.msra.mxu0 %v167
  %187 = vmatprep.subr.bf16.mxu0 0
  %188 = vmatpush1.bf16.msra.mxu0 %v166
  %189 = vmatprep.subr.bf16.mxu0 0
  %190 = vmatpush1.bf16.msra.mxu0 %v165
  %191 = vmatprep.subr.bf16.mxu0 0
  %192 = vmatpush1.bf16.msra.mxu0 %v164
  %193 = vmatprep.subr.bf16.mxu0 0
  %194 = vmatpush1.bf16.msra.mxu0 %v163
  %195 = vmatprep.subr.bf16.mxu0 0
  %196 = vmatpush2.bf16.msra.mxu0 0
  %197 = vmatprep.subr.bf16.mxu0 0
  %198 = vmatpush2.bf16.msra.mxu0 0
  %199 = vmatprep.subr.bf16.mxu0 0
  %200 = vmatpush2.bf16.msra.mxu0 0
  %201 = vmatprep.subr.bf16.mxu0 0
  %202 = vmatpush2.bf16.msra.mxu0 0
  %203 = vmatprep.subr.bf16.mxu0 0
  %204 = vmatpush2.bf16.msra.mxu0 0
  %205 = vmatprep.subr.bf16.mxu0 0
  %206 = vmatpush2.bf16.msra.mxu0 0
  %207 = vmatprep.subr.bf16.mxu0 0
  %208 = vmatpush2.bf16.msra.mxu0 0
  %209 = vmatprep.subr.bf16.mxu0 0
  %210 = vmatpush2.bf16.msra.mxu0 0
  %211 = vmatprep.mubr.bf16.mxu0 0
  %212 = vmatmul.mubr.bf16.gmra.mxu0 %v115
  %v213 = vpop.f32.mrf.mxu0
  %v214 = vadd.f32 0.0, %v213
  %v215 = vpop.f32.mrf.mxu0
  %v216 = vpop.f32.mrf.mxu0
  %v217 = vadd.f32 0.0, %v216
  %v218 = vpop.f32.mrf.mxu0
  %219 = vmatprep.mubr.bf16.mxu0 0
  %220 = vmatmul.mubr.bf16.gmra.mxu0 %v116
  %v221 = vpop.f32.mrf.mxu0
  %v222 = vadd.f32 0.0, %v221
  %v223 = vpop.f32.mrf.mxu0
  %v224 = vpop.f32.mrf.mxu0
  %v225 = vadd.f32 0.0, %v224
  %v226 = vpop.f32.mrf.mxu0
  %227 = vmatprep.mubr.bf16.mxu0 0
  %228 = vmatmul.mubr.bf16.gmra.mxu0 %v117
  %v229 = vpop.f32.mrf.mxu0
  %v230 = vadd.f32 0.0, %v229
  %v231 = vpop.f32.mrf.mxu0
  %v232 = vpop.f32.mrf.mxu0
  %v233 = vadd.f32 0.0, %v232
  %v234 = vpop.f32.mrf.mxu0
  %235 = vmatprep.mubr.bf16.mxu0 0
  %236 = vmatmul.mubr.bf16.gmra.mxu0 %v118
  %v237 = vpop.f32.mrf.mxu0
  %v238 = vadd.f32 0.0, %v237
  %v239 = vpop.f32.mrf.mxu0
  %v240 = vpop.f32.mrf.mxu0
  %v241 = vadd.f32 0.0, %v240
  %v242 = vpop.f32.mrf.mxu0
  %243 = vmatprep.mubr.bf16.mxu0 0
  %244 = vmatmul.mubr.bf16.gmra.mxu0 %v119
  %v245 = vpop.f32.mrf.mxu0
  %v246 = vadd.f32 0.0, %v245
  %v247 = vpop.f32.mrf.mxu0
  %v248 = vpop.f32.mrf.mxu0
  %v249 = vadd.f32 0.0, %v248
  %v250 = vpop.f32.mrf.mxu0
  %251 = vmatprep.mubr.bf16.mxu0 0
  %252 = vmatmul.mubr.bf16.gmra.mxu0 %v120
  %v253 = vpop.f32.mrf.mxu0
  %v254 = vadd.f32 0.0, %v253
  %v255 = vpop.f32.mrf.mxu0
  %v256 = vpop.f32.mrf.mxu0
  %v257 = vadd.f32 0.0, %v256
  %v258 = vpop.f32.mrf.mxu0
  %259 = vmatprep.mubr.bf16.mxu0 0
  %260 = vmatmul.mubr.bf16.gmra.mxu0 %v121
  %v261 = vpop.f32.mrf.mxu0
  %v262 = vadd.f32 0.0, %v261
  %v263 = vpop.f32.mrf.mxu0
  %v264 = vpop.f32.mrf.mxu0
  %v265 = vadd.f32 0.0, %v264
  %v266 = vpop.f32.mrf.mxu0
  %267 = vmatprep.mubr.bf16.mxu0 0
  %268 = vmatmul.mubr.bf16.gmra.mxu0 %v122
  %v269 = vpop.f32.mrf.mxu0
  %v270 = vadd.f32 0.0, %v269
  %v271 = vpop.f32.mrf.mxu0
  %v272 = vpop.f32.mrf.mxu0
  %v273 = vadd.f32 0.0, %v272
  %v274 = vpop.f32.mrf.mxu0
  %275 = vdwg.mxu0
  %v276 = vadd.f32 %v35, %v214
  %v277 = vadd.f32 %v36, %v217
  %v278 = vadd.f32 %v37, %v222
  %v279 = vadd.f32 %v38, %v225
  %v280 = vadd.f32 %v39, %v230
  %v281 = vadd.f32 %v40, %v233
  %v282 = vadd.f32 %v41, %v238
  %v283 = vadd.f32 %v42, %v241
  %v284 = vadd.f32 %v43, %v246
  %v285 = vadd.f32 %v44, %v249
  %v286 = vadd.f32 %v45, %v254
  %v287 = vadd.f32 %v46, %v257
  %v288 = vadd.f32 %v47, %v262
  %v289 = vadd.f32 %v48, %v265
  %v290 = vadd.f32 %v49, %v270
  %v291 = vadd.f32 %v50, %v273
  %292 = vst [vmem:[#allocation2] sm:$0xff] %v276
  %293 = vst [vmem:[#allocation2 + $0x8] sm:$0xff] %v277
  %294 = vst [vmem:[#allocation2 + $0x10] sm:$0xff] %v278
  %295 = vst [vmem:[#allocation2 + $0x18] sm:$0xff] %v279
  %296 = vst [vmem:[#allocation2 + $0x20] sm:$0xff] %v280
  %297 = vst [vmem:[#allocation2 + $0x28] sm:$0xff] %v281
  %298 = vst [vmem:[#allocation2 + $0x30] sm:$0xff] %v282
  %299 = vst [vmem:[#allocation2 + $0x38] sm:$0xff] %v283
  %300 = vst [vmem:[#allocation2 + $0x40] sm:$0xff] %v284
  %301 = vst [vmem:[#allocation2 + $0x48] sm:$0xff] %v285
  %302 = vst [vmem:[#allocation2 + $0x50] sm:$0xff] %v286
  %303 = vst [vmem:[#allocation2 + $0x58] sm:$0xff] %v287
  %304 = vst [vmem:[#allocation2 + $0x60] sm:$0xff] %v288
  %305 = vst [vmem:[#allocation2 + $0x68] sm:$0xff] %v289
  %306 = vst [vmem:[#allocation2 + $0x70] sm:$0xff] %v290
  %307 = vst [vmem:[#allocation2 + $0x78] sm:$0xff] %v291
  // Predicated region
  $region18: #{gcn_forward.5} parent=0 // pred_check
    %p308 = pneg %p15
  $region19: #{gcn_forward.5} parent=0 // pred_check_branch
    %310 = sbr.rel (%p308) target = $region21
  $region20: #{gcn_forward.5} parent=0 // pred_region
    %v311 = vld [vmem:[#allocation2] sm:$0xff]
    %v312 = vld [vmem:[#allocation2 + $0x8] sm:$0xff]
    %v313 = vld [vmem:[#allocation2 + $0x10] sm:$0xff]
    %v314 = vld [vmem:[#allocation2 + $0x18] sm:$0xff]
    %v315 = vld [vmem:[#allocation2 + $0x20] sm:$0xff]
    %v316 = vld [vmem:[#allocation2 + $0x28] sm:$0xff]
    %v317 = vld [vmem:[#allocation2 + $0x30] sm:$0xff]
    %v318 = vld [vmem:[#allocation2 + $0x38] sm:$0xff]
    %v319 = vld [vmem:[#allocation2 + $0x40] sm:$0xff]
    %v320 = vld [vmem:[#allocation2 + $0x48] sm:$0xff]
    %v321 = vld [vmem:[#allocation2 + $0x50] sm:$0xff]
    %v322 = vld [vmem:[#allocation2 + $0x58] sm:$0xff]
    %v323 = vld [vmem:[#allocation2 + $0x60] sm:$0xff]
    %v324 = vld [vmem:[#allocation2 + $0x68] sm:$0xff]
    %v325 = vld [vmem:[#allocation2 + $0x70] sm:$0xff]
    %v326 = vld [vmem:[#allocation2 + $0x78] sm:$0xff]
    %v327 = vld [vmem:[%s2] sm:$0x1]
    %v329 = vlaneseq
    %v330 = vshrl.u32 %v329, 7
    %v331 = vsub.s32 0, %v330
    %v332 = vrot.slane %v327, %v331
    %v334 = vadd.f32 %v311, %v332
    %v335 = vadd.f32 %v312, %v332
    %v336 = vadd.f32 %v313, %v332
    %v337 = vadd.f32 %v314, %v332
    %v338 = vadd.f32 %v315, %v332
    %v339 = vadd.f32 %v316, %v332
    %v340 = vadd.f32 %v317, %v332
    %v341 = vadd.f32 %v318, %v332
    %v342 = vadd.f32 %v319, %v332
    %v343 = vadd.f32 %v320, %v332
    %v344 = vadd.f32 %v321, %v332
    %v345 = vadd.f32 %v322, %v332
    %v346 = vadd.f32 %v323, %v332
    %v347 = vadd.f32 %v324, %v332
    %v348 = vadd.f32 %v325, %v332
    %v349 = vadd.f32 %v326, %v332
    %v350 = vmax.f32 %v334, 0.0
    %v351 = vmax.f32 %v335, 0.0
    %v352 = vmax.f32 %v336, 0.0
    %v353 = vmax.f32 %v337, 0.0
    %v354 = vmax.f32 %v338, 0.0
    %v355 = vmax.f32 %v339, 0.0
    %v356 = vmax.f32 %v340, 0.0
    %v357 = vmax.f32 %v341, 0.0
    %v358 = vmax.f32 %v342, 0.0
    %v359 = vmax.f32 %v343, 0.0
    %v360 = vmax.f32 %v344, 0.0
    %v361 = vmax.f32 %v345, 0.0
    %v362 = vmax.f32 %v346, 0.0
    %v363 = vmax.f32 %v347, 0.0
    %v364 = vmax.f32 %v348, 0.0
    %v365 = vmax.f32 %v349, 0.0
    %v366 = vpack.c.bf16 %v351, %v350
    %v367 = vpack.c.bf16 %v353, %v352
    %v368 = vpack.c.bf16 %v355, %v354
    %v369 = vpack.c.bf16 %v357, %v356
    %v370 = vpack.c.bf16 %v359, %v358
    %v371 = vpack.c.bf16 %v361, %v360
    %v372 = vpack.c.bf16 %v363, %v362
    %v373 = vpack.c.bf16 %v365, %v364
    %v382 = vunpack.c.l.b16 %v366
    %v383 = vunpack.c.h.b16 %v366
    %v384 = vunpack.c.l.b16 %v367
    %v385 = vunpack.c.h.b16 %v367
    %v386 = vunpack.c.l.b16 %v368
    %v387 = vunpack.c.h.b16 %v368
    %v388 = vunpack.c.l.b16 %v369
    %v389 = vunpack.c.h.b16 %v369
    %v390 = vunpack.c.l.b16 %v370
    %v391 = vunpack.c.h.b16 %v370
    %v392 = vunpack.c.l.b16 %v371
    %v393 = vunpack.c.h.b16 %v371
    %v394 = vunpack.c.l.b16 %v372
    %v395 = vunpack.c.h.b16 %v372
    %v396 = vunpack.c.l.b16 %v373
    %v397 = vunpack.c.h.b16 %v373
    %v398 = vpack.c.b16 %v382, %v382
    %v399 = vpack.c.b16 %v383, %v383
    %v400 = vpack.c.b16 %v384, %v384
    %v401 = vpack.c.b16 %v385, %v385
    %v402 = vpack.c.b16 %v386, %v386
    %v403 = vpack.c.b16 %v387, %v387
    %v404 = vpack.c.b16 %v388, %v388
    %v405 = vpack.c.b16 %v389, %v389
    %v406 = vpack.c.b16 %v390, %v390
    %v407 = vpack.c.b16 %v391, %v391
    %v408 = vpack.c.b16 %v392, %v392
    %v409 = vpack.c.b16 %v393, %v393
    %v410 = vpack.c.b16 %v394, %v394
    %v411 = vpack.c.b16 %v395, %v395
    %v412 = vpack.c.b16 %v396, %v396
    %v413 = vpack.c.b16 %v397, %v397
    %430 = vst [vmem:[%s3] sm:$0xf] %v398
    %431 = vst [vmem:[%s3 + $0x4] sm:$0xf] %v399
    %432 = vst [vmem:[%s3 + $0x8] sm:$0xf] %v400
    %433 = vst [vmem:[%s3 + $0xc] sm:$0xf] %v401
    %434 = vst [vmem:[%s3 + $0x10] sm:$0xf] %v402
    %435 = vst [vmem:[%s3 + $0x14] sm:$0xf] %v403
    %436 = vst [vmem:[%s3 + $0x18] sm:$0xf] %v404
    %437 = vst [vmem:[%s3 + $0x1c] sm:$0xf] %v405
    %438 = vst [vmem:[%s3 + $0x20] sm:$0xf] %v406
    %439 = vst [vmem:[%s3 + $0x24] sm:$0xf] %v407
    %440 = vst [vmem:[%s3 + $0x28] sm:$0xf] %v408
    %441 = vst [vmem:[%s3 + $0x2c] sm:$0xf] %v409
    %442 = vst [vmem:[%s3 + $0x30] sm:$0xf] %v410
    %443 = vst [vmem:[%s3 + $0x34] sm:$0xf] %v411
    %444 = vst [vmem:[%s3 + $0x38] sm:$0xf] %v412
    %445 = vst [vmem:[%s3 + $0x3c] sm:$0xf] %v413
  $region21: #{gcn_forward.5} parent=0 // pred_fallthru
    _
  // Predicated region
  $region22: #{gcn_forward.5} parent=0 // pred_check
    _
  $region23: #{gcn_forward.5} parent=0 // pred_check_branch
    %447 = sbr.rel (0) target = $region25
  $region24: #{gcn_forward.5} parent=0 // pred_region
    _
  $region25: #{gcn_forward.5} parent=0 // pred_fallthru
    _
  // Predicated region
  $region26: #{gcn_forward.5} parent=0 // pred_check
    _
  $region27: #{gcn_forward.5} parent=0 // pred_check_branch
    %449 = sbr.rel (0) target = $region29
  $region28: #{gcn_forward.5} parent=0 // pred_region
    _
  $region29: #{gcn_forward.5} parent=0 // pred_fallthru
    _

// kernel: gcn_forward.7
$region0: #{gcn_forward.7}
  #allocation0 [shape = 'u32[]', space=smem, size = 0x4, offset = 0x4, fixed_abs, tag = 'smem constant byte address 0x4 - core index']
  #allocation1 [shape = 'u32[144,128]{1,0:T(1,128)}', space=vmem, size = 0x12000, scoped, tag = 'internal scratch']
  #allocation2 [shape = 'f32[128,128]{1,0:T(8,128)}', space=vmem, size = 0x10000, scoped, tag = 'scratch operand']
  %s0 = inlined_call_operand.vmem [shape: bf16[128,128], index: 0, kind: input, shape index: {}]
  %s1 = inlined_call_operand.vmem [shape: bf16[128,128], index: 1, kind: input, shape index: {}]
  %s2 = inlined_call_operand.vmem [shape: f32[1,128], index: 2, kind: input, shape index: {}]
  %s3 = inlined_call_operand.vmem [shape: f32[1,128], index: 3, kind: input, shape index: {}]
  %s4 = inlined_call_operand.vmem [shape: f32[1,128], index: 4, kind: input, shape index: {}]
  %s5 = inlined_call_operand.vmem [shape: f32[1,128], index: 5, kind: input, shape index: {}]
  %s6 = inlined_call_operand.vmem [shape: f32[1,128], index: 6, kind: input, shape index: {}]
  %s7 = inlined_call_operand.vmem [shape: f32[128,128], index: 7, kind: output, shape index: {}]
  %s8 = sld [smem:[#allocation0]]
  $region46: #{gcn_forward.7} parent=0
    _
  %s10 = ssub.s32 1, %s8
  %s11 = scalar_select 0, %s10, %s8
  // Predicated region
  $region2: #{gcn_forward.7} parent=0 // pred_check
    _
  $region3: #{gcn_forward.7} parent=0 // pred_check_branch
    %13 = sbr.rel (0) target = $region5
  $region4: #{gcn_forward.7} parent=0 // pred_region
    _
  $region5: #{gcn_forward.7} parent=0 // pred_fallthru
    _
  // Predicated region
  $region6: #{gcn_forward.7} parent=0 // pred_check
    _
  $region7: #{gcn_forward.7} parent=0 // pred_check_branch
    %15 = sbr.rel (0) target = $region9
  $region8: #{gcn_forward.7} parent=0 // pred_region
    _
  $region9: #{gcn_forward.7} parent=0 // pred_fallthru
    _
  // Predicated region
  $region10: #{gcn_forward.7} parent=0 // pred_check
    _
  $region11: #{gcn_forward.7} parent=0 // pred_check_branch
    %17 = sbr.rel (0) target = $region13
  $region12: #{gcn_forward.7} parent=0 // pred_region
    _
  $region13: #{gcn_forward.7} parent=0 // pred_fallthru
    _
  // Predicated region
  $region14: #{gcn_forward.7} parent=0 // pred_check
    _
  $region15: #{gcn_forward.7} parent=0 // pred_check_branch
    %19 = sbr.rel (0) target = $region17
  $region16: #{gcn_forward.7} parent=0 // pred_region
    _
  $region17: #{gcn_forward.7} parent=0 // pred_fallthru
    _
  // Predicated region
  $region18: #{gcn_forward.7} parent=0 // pred_check
    _
  $region19: #{gcn_forward.7} parent=0 // pred_check_branch
    %21 = sbr.rel (0) target = $region21
  $region20: #{gcn_forward.7} parent=0 // pred_region
    _
  $region21: #{gcn_forward.7} parent=0 // pred_fallthru
    _
  // Predicated region
  $region22: #{gcn_forward.7} parent=0 // pred_check
    _
  $region23: #{gcn_forward.7} parent=0 // pred_check_branch
    %23 = sbr.rel (0) target = $region25
  $region24: #{gcn_forward.7} parent=0 // pred_region
    _
  $region25: #{gcn_forward.7} parent=0 // pred_fallthru
    _
  // Predicated region
  $region26: #{gcn_forward.7} parent=0 // pred_check
    _
  $region27: #{gcn_forward.7} parent=0 // pred_check_branch
    %25 = sbr.rel (0) target = $region29
  $region28: #{gcn_forward.7} parent=0 // pred_region
    _
  $region29: #{gcn_forward.7} parent=0 // pred_fallthru
    _
  %p27 = scmp.eq.s32.totalorder 0, 0
  // Predicated region
  $region30: #{gcn_forward.7} parent=0 // pred_check
    %p28 = pneg %p27
  $region31: #{gcn_forward.7} parent=0 // pred_check_branch
    %30 = sbr.rel (%p28) target = $region33
  $region32: #{gcn_forward.7} parent=0 // pred_region
    %31 = vst [vmem:[#allocation2] sm:$0xff] 0.0
    %32 = vst [vmem:[#allocation2 + $0x8] sm:$0xff] 0.0
    %33 = vst [vmem:[#allocation2 + $0x10] sm:$0xff] 0.0
    %34 = vst [vmem:[#allocation2 + $0x18] sm:$0xff] 0.0
    %35 = vst [vmem:[#allocation2 + $0x20] sm:$0xff] 0.0
    %36 = vst [vmem:[#allocation2 + $0x28] sm:$0xff] 0.0
    %37 = vst [vmem:[#allocation2 + $0x30] sm:$0xff] 0.0
    %38 = vst [vmem:[#allocation2 + $0x38] sm:$0xff] 0.0
    %39 = vst [vmem:[#allocation2 + $0x40] sm:$0xff] 0.0
    %40 = vst [vmem:[#allocation2 + $0x48] sm:$0xff] 0.0
    %41 = vst [vmem:[#allocation2 + $0x50] sm:$0xff] 0.0
    %42 = vst [vmem:[#allocation2 + $0x58] sm:$0xff] 0.0
    %43 = vst [vmem:[#allocation2 + $0x60] sm:$0xff] 0.0
    %44 = vst [vmem:[#allocation2 + $0x68] sm:$0xff] 0.0
    %45 = vst [vmem:[#allocation2 + $0x70] sm:$0xff] 0.0
    %46 = vst [vmem:[#allocation2 + $0x78] sm:$0xff] 0.0
  $region33: #{gcn_forward.7} parent=0 // pred_fallthru
    _
  %v47 = vld [vmem:[#allocation2] sm:$0xff]
  %v48 = vld [vmem:[#allocation2 + $0x8] sm:$0xff]
  %v49 = vld [vmem:[#allocation2 + $0x10] sm:$0xff]
  %v50 = vld [vmem:[#allocation2 + $0x18] sm:$0xff]
  %v51 = vld [vmem:[#allocation2 + $0x20] sm:$0xff]
  %v52 = vld [vmem:[#allocation2 + $0x28] sm:$0xff]
  %v53 = vld [vmem:[#allocation2 + $0x30] sm:$0xff]
  %v54 = vld [vmem:[#allocation2 + $0x38] sm:$0xff]
  %v55 = vld [vmem:[#allocation2 + $0x40] sm:$0xff]
  %v56 = vld [vmem:[#allocation2 + $0x48] sm:$0xff]
  %v57 = vld [vmem:[#allocation2 + $0x50] sm:$0xff]
  %v58 = vld [vmem:[#allocation2 + $0x58] sm:$0xff]
  %v59 = vld [vmem:[#allocation2 + $0x60] sm:$0xff]
  %v60 = vld [vmem:[#allocation2 + $0x68] sm:$0xff]
  %v61 = vld [vmem:[#allocation2 + $0x70] sm:$0xff]
  %v62 = vld [vmem:[#allocation2 + $0x78] sm:$0xff]
  %v63 = vld [vmem:[%s0] sm:$0xf]
  %v64 = vld [vmem:[%s0 + $0x4] sm:$0xf]
  %v65 = vld [vmem:[%s0 + $0x8] sm:$0xf]
  %v66 = vld [vmem:[%s0 + $0xc] sm:$0xf]
  %v67 = vld [vmem:[%s0 + $0x10] sm:$0xf]
  %v68 = vld [vmem:[%s0 + $0x14] sm:$0xf]
  %v69 = vld [vmem:[%s0 + $0x18] sm:$0xf]
  %v70 = vld [vmem:[%s0 + $0x1c] sm:$0xf]
  %v71 = vld [vmem:[%s0 + $0x20] sm:$0xf]
  %v72 = vld [vmem:[%s0 + $0x24] sm:$0xf]
  %v73 = vld [vmem:[%s0 + $0x28] sm:$0xf]
  %v74 = vld [vmem:[%s0 + $0x2c] sm:$0xf]
  %v75 = vld [vmem:[%s0 + $0x30] sm:$0xf]
  %v76 = vld [vmem:[%s0 + $0x34] sm:$0xf]
  %v77 = vld [vmem:[%s0 + $0x38] sm:$0xf]
  %v78 = vld [vmem:[%s0 + $0x3c] sm:$0xf]
  %v79 = vld [vmem:[%s1] sm:$0xf]
  %v80 = vld [vmem:[%s1 + $0x4] sm:$0xf]
  %v81 = vld [vmem:[%s1 + $0x8] sm:$0xf]
  %v82 = vld [vmem:[%s1 + $0xc] sm:$0xf]
  %v83 = vld [vmem:[%s1 + $0x10] sm:$0xf]
  %v84 = vld [vmem:[%s1 + $0x14] sm:$0xf]
  %v85 = vld [vmem:[%s1 + $0x18] sm:$0xf]
  %v86 = vld [vmem:[%s1 + $0x1c] sm:$0xf]
  %v87 = vld [vmem:[%s1 + $0x20] sm:$0xf]
  %v88 = vld [vmem:[%s1 + $0x24] sm:$0xf]
  %v89 = vld [vmem:[%s1 + $0x28] sm:$0xf]
  %v90 = vld [vmem:[%s1 + $0x2c] sm:$0xf]
  %v91 = vld [vmem:[%s1 + $0x30] sm:$0xf]
  %v92 = vld [vmem:[%s1 + $0x34] sm:$0xf]
  %v93 = vld [vmem:[%s1 + $0x38] sm:$0xf]
  %v94 = vld [vmem:[%s1 + $0x3c] sm:$0xf]
  %v111 = vunpack.c.l.b16 %v63
  %v112 = vunpack.c.l.b16 %v64
  %v113 = vunpack.c.l.b16 %v65
  %v114 = vunpack.c.l.b16 %v66
  %v115 = vunpack.c.l.b16 %v67
  %v116 = vunpack.c.l.b16 %v68
  %v117 = vunpack.c.l.b16 %v69
  %v118 = vunpack.c.l.b16 %v70
  %v119 = vunpack.c.l.b16 %v71
  %v120 = vunpack.c.l.b16 %v72
  %v121 = vunpack.c.l.b16 %v73
  %v122 = vunpack.c.l.b16 %v74
  %v123 = vunpack.c.l.b16 %v75
  %v124 = vunpack.c.l.b16 %v76
  %v125 = vunpack.c.l.b16 %v77
  %v126 = vunpack.c.l.b16 %v78
  %v127 = vpack.c.b16 %v112, %v111
  %v128 = vpack.c.b16 %v114, %v113
  %v129 = vpack.c.b16 %v116, %v115
  %v130 = vpack.c.b16 %v118, %v117
  %v131 = vpack.c.b16 %v120, %v119
  %v132 = vpack.c.b16 %v122, %v121
  %v133 = vpack.c.b16 %v124, %v123
  %v134 = vpack.c.b16 %v126, %v125
  %v159 = vunpack.c.l.b16 %v79
  %v160 = vunpack.c.l.b16 %v80
  %v161 = vunpack.c.l.b16 %v81
  %v162 = vunpack.c.l.b16 %v82
  %v163 = vunpack.c.l.b16 %v83
  %v164 = vunpack.c.l.b16 %v84
  %v165 = vunpack.c.l.b16 %v85
  %v166 = vunpack.c.l.b16 %v86
  %v167 = vunpack.c.l.b16 %v87
  %v168 = vunpack.c.l.b16 %v88
  %v169 = vunpack.c.l.b16 %v89
  %v170 = vunpack.c.l.b16 %v90
  %v171 = vunpack.c.l.b16 %v91
  %v172 = vunpack.c.l.b16 %v92
  %v173 = vunpack.c.l.b16 %v93
  %v174 = vunpack.c.l.b16 %v94
  %v175 = vpack.c.b16 %v160, %v159
  %v176 = vpack.c.b16 %v162, %v161
  %v177 = vpack.c.b16 %v164, %v163
  %v178 = vpack.c.b16 %v166, %v165
  %v179 = vpack.c.b16 %v168, %v167
  %v180 = vpack.c.b16 %v170, %v169
  %v181 = vpack.c.b16 %v172, %v171
  %v182 = vpack.c.b16 %v174, %v173
  %191 = vmatprep.subr.bf16.mxu0 0
  %192 = vmatpush1.bf16.msra.mxu0 %v182
  %193 = vmatprep.subr.bf16.mxu0 0
  %194 = vmatpush1.bf16.msra.mxu0 %v181
  %195 = vmatprep.subr.bf16.mxu0 0
  %196 = vmatpush1.bf16.msra.mxu0 %v180
  %197 = vmatprep.subr.bf16.mxu0 0
  %198 = vmatpush1.bf16.msra.mxu0 %v179
  %199 = vmatprep.subr.bf16.mxu0 0
  %200 = vmatpush1.bf16.msra.mxu0 %v178
  %201 = vmatprep.subr.bf16.mxu0 0
  %202 = vmatpush1.bf16.msra.mxu0 %v177
  %203 = vmatprep.subr.bf16.mxu0 0
  %204 = vmatpush1.bf16.msra.mxu0 %v176
  %205 = vmatprep.subr.bf16.mxu0 0
  %206 = vmatpush1.bf16.msra.mxu0 %v175
  %207 = vmatprep.subr.bf16.mxu0 0
  %208 = vmatpush2.bf16.msra.mxu0 0
  %209 = vmatprep.subr.bf16.mxu0 0
  %210 = vmatpush2.bf16.msra.mxu0 0
  %211 = vmatprep.subr.bf16.mxu0 0
  %212 = vmatpush2.bf16.msra.mxu0 0
  %213 = vmatprep.subr.bf16.mxu0 0
  %214 = vmatpush2.bf16.msra.mxu0 0
  %215 = vmatprep.subr.bf16.mxu0 0
  %216 = vmatpush2.bf16.msra.mxu0 0
  %217 = vmatprep.subr.bf16.mxu0 0
  %218 = vmatpush2.bf16.msra.mxu0 0
  %219 = vmatprep.subr.bf16.mxu0 0
  %220 = vmatpush2.bf16.msra.mxu0 0
  %221 = vmatprep.subr.bf16.mxu0 0
  %222 = vmatpush2.bf16.msra.mxu0 0
  %223 = vmatprep.mubr.bf16.mxu0 0
  %224 = vmatmul.mubr.bf16.gmra.mxu0 %v127
  %v225 = vpop.f32.mrf.mxu0
  %v226 = vadd.f32 0.0, %v225
  %v227 = vpop.f32.mrf.mxu0
  %v228 = vpop.f32.mrf.mxu0
  %v229 = vadd.f32 0.0, %v228
  %v230 = vpop.f32.mrf.mxu0
  %231 = vmatprep.mubr.bf16.mxu0 0
  %232 = vmatmul.mubr.bf16.gmra.mxu0 %v128
  %v233 = vpop.f32.mrf.mxu0
  %v234 = vadd.f32 0.0, %v233
  %v235 = vpop.f32.mrf.mxu0
  %v236 = vpop.f32.mrf.mxu0
  %v237 = vadd.f32 0.0, %v236
  %v238 = vpop.f32.mrf.mxu0
  %239 = vmatprep.mubr.bf16.mxu0 0
  %240 = vmatmul.mubr.bf16.gmra.mxu0 %v129
  %v241 = vpop.f32.mrf.mxu0
  %v242 = vadd.f32 0.0, %v241
  %v243 = vpop.f32.mrf.mxu0
  %v244 = vpop.f32.mrf.mxu0
  %v245 = vadd.f32 0.0, %v244
  %v246 = vpop.f32.mrf.mxu0
  %247 = vmatprep.mubr.bf16.mxu0 0
  %248 = vmatmul.mubr.bf16.gmra.mxu0 %v130
  %v249 = vpop.f32.mrf.mxu0
  %v250 = vadd.f32 0.0, %v249
  %v251 = vpop.f32.mrf.mxu0
  %v252 = vpop.f32.mrf.mxu0
  %v253 = vadd.f32 0.0, %v252
  %v254 = vpop.f32.mrf.mxu0
  %255 = vmatprep.mubr.bf16.mxu0 0
  %256 = vmatmul.mubr.bf16.gmra.mxu0 %v131
  %v257 = vpop.f32.mrf.mxu0
  %v258 = vadd.f32 0.0, %v257
  %v259 = vpop.f32.mrf.mxu0
  %v260 = vpop.f32.mrf.mxu0
  %v261 = vadd.f32 0.0, %v260
  %v262 = vpop.f32.mrf.mxu0
  %263 = vmatprep.mubr.bf16.mxu0 0
  %264 = vmatmul.mubr.bf16.gmra.mxu0 %v132
  %v265 = vpop.f32.mrf.mxu0
  %v266 = vadd.f32 0.0, %v265
  %v267 = vpop.f32.mrf.mxu0
  %v268 = vpop.f32.mrf.mxu0
  %v269 = vadd.f32 0.0, %v268
  %v270 = vpop.f32.mrf.mxu0
  %271 = vmatprep.mubr.bf16.mxu0 0
  %272 = vmatmul.mubr.bf16.gmra.mxu0 %v133
  %v273 = vpop.f32.mrf.mxu0
  %v274 = vadd.f32 0.0, %v273
  %v275 = vpop.f32.mrf.mxu0
  %v276 = vpop.f32.mrf.mxu0
  %v277 = vadd.f32 0.0, %v276
  %v278 = vpop.f32.mrf.mxu0
  %279 = vmatprep.mubr.bf16.mxu0 0
  %280 = vmatmul.mubr.bf16.gmra.mxu0 %v134
  %v281 = vpop.f32.mrf.mxu0
  %v282 = vadd.f32 0.0, %v281
  %v283 = vpop.f32.mrf.mxu0
  %v284 = vpop.f32.mrf.mxu0
  %v285 = vadd.f32 0.0, %v284
  %v286 = vpop.f32.mrf.mxu0
  %287 = vdwg.mxu0
  %v288 = vadd.f32 %v47, %v226
  %v289 = vadd.f32 %v48, %v229
  %v290 = vadd.f32 %v49, %v234
  %v291 = vadd.f32 %v50, %v237
  %v292 = vadd.f32 %v51, %v242
  %v293 = vadd.f32 %v52, %v245
  %v294 = vadd.f32 %v53, %v250
  %v295 = vadd.f32 %v54, %v253
  %v296 = vadd.f32 %v55, %v258
  %v297 = vadd.f32 %v56, %v261
  %v298 = vadd.f32 %v57, %v266
  %v299 = vadd.f32 %v58, %v269
  %v300 = vadd.f32 %v59, %v274
  %v301 = vadd.f32 %v60, %v277
  %v302 = vadd.f32 %v61, %v282
  %v303 = vadd.f32 %v62, %v285
  %304 = vst [vmem:[#allocation2] sm:$0xff] %v288
  %305 = vst [vmem:[#allocation2 + $0x8] sm:$0xff] %v289
  %306 = vst [vmem:[#allocation2 + $0x10] sm:$0xff] %v290
  %307 = vst [vmem:[#allocation2 + $0x18] sm:$0xff] %v291
  %308 = vst [vmem:[#allocation2 + $0x20] sm:$0xff] %v292
  %309 = vst [vmem:[#allocation2 + $0x28] sm:$0xff] %v293
  %310 = vst [vmem:[#allocation2 + $0x30] sm:$0xff] %v294
  %311 = vst [vmem:[#allocation2 + $0x38] sm:$0xff] %v295
  %312 = vst [vmem:[#allocation2 + $0x40] sm:$0xff] %v296
  %313 = vst [vmem:[#allocation2 + $0x48] sm:$0xff] %v297
  %314 = vst [vmem:[#allocation2 + $0x50] sm:$0xff] %v298
  %315 = vst [vmem:[#allocation2 + $0x58] sm:$0xff] %v299
  %316 = vst [vmem:[#allocation2 + $0x60] sm:$0xff] %v300
  %317 = vst [vmem:[#allocation2 + $0x68] sm:$0xff] %v301
  %318 = vst [vmem:[#allocation2 + $0x70] sm:$0xff] %v302
  %319 = vst [vmem:[#allocation2 + $0x78] sm:$0xff] %v303
  // Predicated region
  $region34: #{gcn_forward.7} parent=0 // pred_check
    %p320 = pneg %p27
  $region35: #{gcn_forward.7} parent=0 // pred_check_branch
    %322 = sbr.rel (%p320) target = $region37
  $region36: #{gcn_forward.7} parent=0 // pred_region
    %v323 = vld [vmem:[#allocation2] sm:$0xff]
    %v324 = vld [vmem:[#allocation2 + $0x8] sm:$0xff]
    %v325 = vld [vmem:[#allocation2 + $0x10] sm:$0xff]
    %v326 = vld [vmem:[#allocation2 + $0x18] sm:$0xff]
    %v327 = vld [vmem:[#allocation2 + $0x20] sm:$0xff]
    %v328 = vld [vmem:[#allocation2 + $0x28] sm:$0xff]
    %v329 = vld [vmem:[#allocation2 + $0x30] sm:$0xff]
    %v330 = vld [vmem:[#allocation2 + $0x38] sm:$0xff]
    %v331 = vld [vmem:[#allocation2 + $0x40] sm:$0xff]
    %v332 = vld [vmem:[#allocation2 + $0x48] sm:$0xff]
    %v333 = vld [vmem:[#allocation2 + $0x50] sm:$0xff]
    %v334 = vld [vmem:[#allocation2 + $0x58] sm:$0xff]
    %v335 = vld [vmem:[#allocation2 + $0x60] sm:$0xff]
    %v336 = vld [vmem:[#allocation2 + $0x68] sm:$0xff]
    %v337 = vld [vmem:[#allocation2 + $0x70] sm:$0xff]
    %v338 = vld [vmem:[#allocation2 + $0x78] sm:$0xff]
    %v339 = vld [vmem:[%s2] sm:$0x1]
    %v341 = vlaneseq
    %v342 = vshrl.u32 %v341, 7
    %v343 = vsub.s32 0, %v342
    %v344 = vrot.slane %v339, %v343
    %v346 = vadd.f32 %v323, %v344
    %v347 = vadd.f32 %v324, %v344
    %v348 = vadd.f32 %v325, %v344
    %v349 = vadd.f32 %v326, %v344
    %v350 = vadd.f32 %v327, %v344
    %v351 = vadd.f32 %v328, %v344
    %v352 = vadd.f32 %v329, %v344
    %v353 = vadd.f32 %v330, %v344
    %v354 = vadd.f32 %v331, %v344
    %v355 = vadd.f32 %v332, %v344
    %v356 = vadd.f32 %v333, %v344
    %v357 = vadd.f32 %v334, %v344
    %v358 = vadd.f32 %v335, %v344
    %v359 = vadd.f32 %v336, %v344
    %v360 = vadd.f32 %v337, %v344
    %v361 = vadd.f32 %v338, %v344
    %v362 = vmax.f32 %v346, 0.0
    %v363 = vmax.f32 %v347, 0.0
    %v364 = vmax.f32 %v348, 0.0
    %v365 = vmax.f32 %v349, 0.0
    %v366 = vmax.f32 %v350, 0.0
    %v367 = vmax.f32 %v351, 0.0
    %v368 = vmax.f32 %v352, 0.0
    %v369 = vmax.f32 %v353, 0.0
    %v370 = vmax.f32 %v354, 0.0
    %v371 = vmax.f32 %v355, 0.0
    %v372 = vmax.f32 %v356, 0.0
    %v373 = vmax.f32 %v357, 0.0
    %v374 = vmax.f32 %v358, 0.0
    %v375 = vmax.f32 %v359, 0.0
    %v376 = vmax.f32 %v360, 0.0
    %v377 = vmax.f32 %v361, 0.0
    %v378 = vld [vmem:[%s3] sm:$0x1]
    %v380 = vlaneseq
    %v381 = vshrl.u32 %v380, 7
    %v382 = vsub.s32 0, %v381
    %v383 = vrot.slane %v378, %v382
    %v385 = vmul.f32 %v362, %v383
    %v386 = vmul.f32 %v363, %v383
    %v387 = vmul.f32 %v364, %v383
    %v388 = vmul.f32 %v365, %v383
    %v389 = vmul.f32 %v366, %v383
    %v390 = vmul.f32 %v367, %v383
    %v391 = vmul.f32 %v368, %v383
    %v392 = vmul.f32 %v369, %v383
    %v393 = vmul.f32 %v370, %v383
    %v394 = vmul.f32 %v371, %v383
    %v395 = vmul.f32 %v372, %v383
    %v396 = vmul.f32 %v373, %v383
    %v397 = vmul.f32 %v374, %v383
    %v398 = vmul.f32 %v375, %v383
    %v399 = vmul.f32 %v376, %v383
    %v400 = vmul.f32 %v377, %v383
    %v401 = vld [vmem:[%s4] sm:$0x1]
    %v403 = vlaneseq
    %v404 = vshrl.u32 %v403, 7
    %v405 = vsub.s32 0, %v404
    %v406 = vrot.slane %v401, %v405
    %v408 = vadd.f32 %v385, %v406
    %v409 = vadd.f32 %v386, %v406
    %v410 = vadd.f32 %v387, %v406
    %v411 = vadd.f32 %v388, %v406
    %v412 = vadd.f32 %v389, %v406
    %v413 = vadd.f32 %v390, %v406
    %v414 = vadd.f32 %v391, %v406
    %v415 = vadd.f32 %v392, %v406
    %v416 = vadd.f32 %v393, %v406
    %v417 = vadd.f32 %v394, %v406
    %v418 = vadd.f32 %v395, %v406
    %v419 = vadd.f32 %v396, %v406
    %v420 = vadd.f32 %v397, %v406
    %v421 = vadd.f32 %v398, %v406
    %v422 = vadd.f32 %v399, %v406
    %v423 = vadd.f32 %v400, %v406
    %424 = vadd.xlane.f32.xlu0 %v408
    %v425 = vpop.xlane.xlu0 %424
    %426 = vadd.xlane.f32.xlu0 %v409
    %v427 = vpop.xlane.xlu0 %426
    %428 = vadd.xlane.f32.xlu0 %v410
    %v429 = vpop.xlane.xlu0 %428
    %430 = vadd.xlane.f32.xlu0 %v411
    %v431 = vpop.xlane.xlu0 %430
    %432 = vadd.xlane.f32.xlu0 %v412
    %v433 = vpop.xlane.xlu0 %432
    %434 = vadd.xlane.f32.xlu0 %v413
    %v435 = vpop.xlane.xlu0 %434
    %436 = vadd.xlane.f32.xlu0 %v414
    %v437 = vpop.xlane.xlu0 %436
    %438 = vadd.xlane.f32.xlu0 %v415
    %v439 = vpop.xlane.xlu0 %438
    %440 = vadd.xlane.f32.xlu0 %v416
    %v441 = vpop.xlane.xlu0 %440
    %442 = vadd.xlane.f32.xlu0 %v417
    %v443 = vpop.xlane.xlu0 %442
    %444 = vadd.xlane.f32.xlu0 %v418
    %v445 = vpop.xlane.xlu0 %444
    %446 = vadd.xlane.f32.xlu0 %v419
    %v447 = vpop.xlane.xlu0 %446
    %448 = vadd.xlane.f32.xlu0 %v420
    %v449 = vpop.xlane.xlu0 %448
    %450 = vadd.xlane.f32.xlu0 %v421
    %v451 = vpop.xlane.xlu0 %450
    %452 = vadd.xlane.f32.xlu0 %v422
    %v453 = vpop.xlane.xlu0 %452
    %454 = vadd.xlane.f32.xlu0 %v423
    %v455 = vpop.xlane.xlu0 %454
    %v456 = vmul.f32 %v425, 0.0625
    %v457 = vmul.f32 %v427, 0.0625
    %v458 = vmul.f32 %v429, 0.0625
    %v459 = vmul.f32 %v431, 0.0625
    %v460 = vmul.f32 %v433, 0.0625
    %v461 = vmul.f32 %v435, 0.0625
    %v462 = vmul.f32 %v437, 0.0625
    %v463 = vmul.f32 %v439, 0.0625
    %v464 = vmul.f32 %v441, 0.0625
    %v465 = vmul.f32 %v443, 0.0625
    %v466 = vmul.f32 %v445, 0.0625
    %v467 = vmul.f32 %v447, 0.0625
    %v468 = vmul.f32 %v449, 0.0625
    %v469 = vmul.f32 %v451, 0.0625
    %v470 = vmul.f32 %v453, 0.0625
    %v471 = vmul.f32 %v455, 0.0625
    %v472 = vmul.f32 %v408, %v408
    %v473 = vmul.f32 %v409, %v409
    %v474 = vmul.f32 %v410, %v410
    %v475 = vmul.f32 %v411, %v411
    %v476 = vmul.f32 %v412, %v412
    %v477 = vmul.f32 %v413, %v413
    %v478 = vmul.f32 %v414, %v414
    %v479 = vmul.f32 %v415, %v415
    %v480 = vmul.f32 %v416, %v416
    %v481 = vmul.f32 %v417, %v417
    %v482 = vmul.f32 %v418, %v418
    %v483 = vmul.f32 %v419, %v419
    %v484 = vmul.f32 %v420, %v420
    %v485 = vmul.f32 %v421, %v421
    %v486 = vmul.f32 %v422, %v422
    %v487 = vmul.f32 %v423, %v423
    %488 = vadd.xlane.f32.xlu0 %v472
    %v489 = vpop.xlane.xlu0 %488
    %490 = vadd.xlane.f32.xlu0 %v473
    %v491 = vpop.xlane.xlu0 %490
    %492 = vadd.xlane.f32.xlu0 %v474
    %v493 = vpop.xlane.xlu0 %492
    %494 = vadd.xlane.f32.xlu0 %v475
    %v495 = vpop.xlane.xlu0 %494
    %496 = vadd.xlane.f32.xlu0 %v476
    %v497 = vpop.xlane.xlu0 %496
    %498 = vadd.xlane.f32.xlu0 %v477
    %v499 = vpop.xlane.xlu0 %498
    %500 = vadd.xlane.f32.xlu0 %v478
    %v501 = vpop.xlane.xlu0 %500
    %502 = vadd.xlane.f32.xlu0 %v479
    %v503 = vpop.xlane.xlu0 %502
    %504 = vadd.xlane.f32.xlu0 %v480
    %v505 = vpop.xlane.xlu0 %504
    %506 = vadd.xlane.f32.xlu0 %v481
    %v507 = vpop.xlane.xlu0 %506
    %508 = vadd.xlane.f32.xlu0 %v482
    %v509 = vpop.xlane.xlu0 %508
    %510 = vadd.xlane.f32.xlu0 %v483
    %v511 = vpop.xlane.xlu0 %510
    %512 = vadd.xlane.f32.xlu0 %v484
    %v513 = vpop.xlane.xlu0 %512
    %514 = vadd.xlane.f32.xlu0 %v485
    %v515 = vpop.xlane.xlu0 %514
    %516 = vadd.xlane.f32.xlu0 %v486
    %v517 = vpop.xlane.xlu0 %516
    %518 = vadd.xlane.f32.xlu0 %v487
    %v519 = vpop.xlane.xlu0 %518
    %v520 = vmul.f32 %v489, 0.0625
    %v521 = vmul.f32 %v491, 0.0625
    %v522 = vmul.f32 %v493, 0.0625
    %v523 = vmul.f32 %v495, 0.0625
    %v524 = vmul.f32 %v497, 0.0625
    %v525 = vmul.f32 %v499, 0.0625
    %v526 = vmul.f32 %v501, 0.0625
    %v527 = vmul.f32 %v503, 0.0625
    %v528 = vmul.f32 %v505, 0.0625
    %v529 = vmul.f32 %v507, 0.0625
    %v530 = vmul.f32 %v509, 0.0625
    %v531 = vmul.f32 %v511, 0.0625
    %v532 = vmul.f32 %v513, 0.0625
    %v533 = vmul.f32 %v515, 0.0625
    %v534 = vmul.f32 %v517, 0.0625
    %v535 = vmul.f32 %v519, 0.0625
    %v536 = vmul.f32 %v456, %v456
    %v537 = vmul.f32 %v457, %v457
    %v538 = vmul.f32 %v458, %v458
    %v539 = vmul.f32 %v459, %v459
    %v540 = vmul.f32 %v460, %v460
    %v541 = vmul.f32 %v461, %v461
    %v542 = vmul.f32 %v462, %v462
    %v543 = vmul.f32 %v463, %v463
    %v544 = vmul.f32 %v464, %v464
    %v545 = vmul.f32 %v465, %v465
    %v546 = vmul.f32 %v466, %v466
    %v547 = vmul.f32 %v467, %v467
    %v548 = vmul.f32 %v468, %v468
    %v549 = vmul.f32 %v469, %v469
    %v550 = vmul.f32 %v470, %v470
    %v551 = vmul.f32 %v471, %v471
    %v552 = vsub.f32 %v520, %v536
    %v553 = vsub.f32 %v521, %v537
    %v554 = vsub.f32 %v522, %v538
    %v555 = vsub.f32 %v523, %v539
    %v556 = vsub.f32 %v524, %v540
    %v557 = vsub.f32 %v525, %v541
    %v558 = vsub.f32 %v526, %v542
    %v559 = vsub.f32 %v527, %v543
    %v560 = vsub.f32 %v528, %v544
    %v561 = vsub.f32 %v529, %v545
    %v562 = vsub.f32 %v530, %v546
    %v563 = vsub.f32 %v531, %v547
    %v564 = vsub.f32 %v532, %v548
    %v565 = vsub.f32 %v533, %v549
    %v566 = vsub.f32 %v534, %v550
    %v567 = vsub.f32 %v535, %v551
    %v568 = vsub.f32 %v408, %v456
    %v569 = vsub.f32 %v409, %v457
    %v570 = vsub.f32 %v410, %v458
    %v571 = vsub.f32 %v411, %v459
    %v572 = vsub.f32 %v412, %v460
    %v573 = vsub.f32 %v413, %v461
    %v574 = vsub.f32 %v414, %v462
    %v575 = vsub.f32 %v415, %v463
    %v576 = vsub.f32 %v416, %v464
    %v577 = vsub.f32 %v417, %v465
    %v578 = vsub.f32 %v418, %v466
    %v579 = vsub.f32 %v419, %v467
    %v580 = vsub.f32 %v420, %v468
    %v581 = vsub.f32 %v421, %v469
    %v582 = vsub.f32 %v422, %v470
    %v583 = vsub.f32 %v423, %v471
    %v584 = vadd.f32 %v552, 1e-05
    %v585 = vadd.f32 %v553, 1e-05
    %v586 = vadd.f32 %v554, 1e-05
    %v587 = vadd.f32 %v555, 1e-05
    %v588 = vadd.f32 %v556, 1e-05
    %v589 = vadd.f32 %v557, 1e-05
    %v590 = vadd.f32 %v558, 1e-05
    %v591 = vadd.f32 %v559, 1e-05
    %v592 = vadd.f32 %v560, 1e-05
    %v593 = vadd.f32 %v561, 1e-05
    %v594 = vadd.f32 %v562, 1e-05
    %v595 = vadd.f32 %v563, 1e-05
    %v596 = vadd.f32 %v564, 1e-05
    %v597 = vadd.f32 %v565, 1e-05
    %v598 = vadd.f32 %v566, 1e-05
    %v599 = vadd.f32 %v567, 1e-05
    %v600 = vrsqrt.pop %v584
    %v601 = vrsqrt.pop %v585
    %v602 = vrsqrt.pop %v586
    %v603 = vrsqrt.pop %v587
    %v604 = vrsqrt.pop %v588
    %v605 = vrsqrt.pop %v589
    %v606 = vrsqrt.pop %v590
    %v607 = vrsqrt.pop %v591
    %v608 = vrsqrt.pop %v592
    %v609 = vrsqrt.pop %v593
    %v610 = vrsqrt.pop %v594
    %v611 = vrsqrt.pop %v595
    %v612 = vrsqrt.pop %v596
    %v613 = vrsqrt.pop %v597
    %v614 = vrsqrt.pop %v598
    %v615 = vrsqrt.pop %v599
    %v616 = vmul.f32 %v568, %v600
    %v617 = vmul.f32 %v569, %v601
    %v618 = vmul.f32 %v570, %v602
    %v619 = vmul.f32 %v571, %v603
    %v620 = vmul.f32 %v572, %v604
    %v621 = vmul.f32 %v573, %v605
    %v622 = vmul.f32 %v574, %v606
    %v623 = vmul.f32 %v575, %v607
    %v624 = vmul.f32 %v576, %v608
    %v625 = vmul.f32 %v577, %v609
    %v626 = vmul.f32 %v578, %v610
    %v627 = vmul.f32 %v579, %v611
    %v628 = vmul.f32 %v580, %v612
    %v629 = vmul.f32 %v581, %v613
    %v630 = vmul.f32 %v582, %v614
    %v631 = vmul.f32 %v583, %v615
    %v632 = vld [vmem:[%s5] sm:$0x1]
    %v634 = vlaneseq
    %v635 = vshrl.u32 %v634, 7
    %v636 = vsub.s32 0, %v635
    %v637 = vrot.slane %v632, %v636
    %v639 = vmul.f32 %v616, %v637
    %v640 = vmul.f32 %v617, %v637
    %v641 = vmul.f32 %v618, %v637
    %v642 = vmul.f32 %v619, %v637
    %v643 = vmul.f32 %v620, %v637
    %v644 = vmul.f32 %v621, %v637
    %v645 = vmul.f32 %v622, %v637
    %v646 = vmul.f32 %v623, %v637
    %v647 = vmul.f32 %v624, %v637
    %v648 = vmul.f32 %v625, %v637
    %v649 = vmul.f32 %v626, %v637
    %v650 = vmul.f32 %v627, %v637
    %v651 = vmul.f32 %v628, %v637
    %v652 = vmul.f32 %v629, %v637
    %v653 = vmul.f32 %v630, %v637
    %v654 = vmul.f32 %v631, %v637
    %v655 = vld [vmem:[%s6] sm:$0x1]
    %v657 = vlaneseq
    %v658 = vshrl.u32 %v657, 7
    %v659 = vsub.s32 0, %v658
    %v660 = vrot.slane %v655, %v659
    %v662 = vadd.f32 %v639, %v660
    %v663 = vadd.f32 %v640, %v660
    %v664 = vadd.f32 %v641, %v660
    %v665 = vadd.f32 %v642, %v660
    %v666 = vadd.f32 %v643, %v660
    %v667 = vadd.f32 %v644, %v660
    %v668 = vadd.f32 %v645, %v660
    %v669 = vadd.f32 %v646, %v660
    %v670 = vadd.f32 %v647, %v660
    %v671 = vadd.f32 %v648, %v660
    %v672 = vadd.f32 %v649, %v660
    %v673 = vadd.f32 %v650, %v660
    %v674 = vadd.f32 %v651, %v660
    %v675 = vadd.f32 %v652, %v660
    %v676 = vadd.f32 %v653, %v660
    %v677 = vadd.f32 %v654, %v660
    %678 = vst [vmem:[%s7] sm:$0xff] %v662
    %679 = vst [vmem:[%s7 + $0x8] sm:$0xff] %v663
    %680 = vst [vmem:[%s7 + $0x10] sm:$0xff] %v664
    %681 = vst [vmem:[%s7 + $0x18] sm:$0xff] %v665
    %682 = vst [vmem:[%s7 + $0x20] sm:$0xff] %v666
    %683 = vst [vmem:[%s7 + $0x28] sm:$0xff] %v667
    %684 = vst [vmem:[%s7 + $0x30] sm:$0xff] %v668
    %685 = vst [vmem:[%s7 + $0x38] sm:$0xff] %v669
    %686 = vst [vmem:[%s7 + $0x40] sm:$0xff] %v670
    %687 = vst [vmem:[%s7 + $0x48] sm:$0xff] %v671
    %688 = vst [vmem:[%s7 + $0x50] sm:$0xff] %v672
    %689 = vst [vmem:[%s7 + $0x58] sm:$0xff] %v673
    %690 = vst [vmem:[%s7 + $0x60] sm:$0xff] %v674
    %691 = vst [vmem:[%s7 + $0x68] sm:$0xff] %v675
    %692 = vst [vmem:[%s7 + $0x70] sm:$0xff] %v676
    %693 = vst [vmem:[%s7 + $0x78] sm:$0xff] %v677
  $region37: #{gcn_forward.7} parent=0 // pred_fallthru
    _
  // Predicated region
  $region38: #{gcn_forward.7} parent=0 // pred_check
    _
  $region39: #{gcn_forward.7} parent=0 // pred_check_branch
    %695 = sbr.rel (0) target = $region41
  $region40: #{gcn_forward.7} parent=0 // pred_region
    _
  $region41: #{gcn_forward.7} parent=0 // pred_fallthru
    _
  // Predicated region
  $region42: #{gcn_forward.7} parent=0 // pred_check
    _
  $region43: #{gcn_forward.7} parent=0 // pred_check_branch
    %697 = sbr.rel (0) target = $region45
  $region44: #{gcn_forward.7} parent=0 // pred_region
    _
  $region45: #{gcn_forward.7} parent=0 // pred_fallthru
    _

</llo_original>
